<compile_context>
chip_gen: v6e
topology: v6e:2x2x1
jax: 0.10.0
libtpu: 0.0.40
codegen_flags: <defaults>
</compile_context>

<pallas_src>
import functools
import math

import jax
import jax.numpy as jnp
from jax.experimental import pallas as pl
from jax.experimental.pallas import tpu as pltpu


def _largest_divisor_leq(n, cap):
    cap = max(1, min(n, cap))
    for d in range(cap, 0, -1):
        if n % d == 0:
            return d
    return 1


def _spatial_attention_kernel(x_ref, w_ref, o_ref, sum_ref, max_ref, *,
                              k, pad, h, w, c_total):
    """One grid step = (batch block i, channel block ci).

    x_ref  : (TB, TC, H, W) VMEM, native dtype, unpadded.
    w_ref  : (2*k*k,) f32 SMEM, OIHW-flattened conv weights, (chan, ki, kj) order.
    o_ref  : (TB, H, W) VMEM output block (same block across the channel grid axis).
    sum_ref/max_ref : (TB, H+2p, W+2p) f32 VMEM scratch; zero halo is the conv's zero
        padding, the interior holds the running channel sum / max.
    """
    ci = pl.program_id(1)
    n_c = pl.num_programs(1)

    # Per-step channel reduction; cast to f32 in vregs (HBM bytes stay native dtype).
    xb = x_ref[...].astype(jnp.float32)              # (TB, TC, H, W), TC kept small
    s_part = jnp.sum(xb, axis=1)                     # (TB, H, W)
    m_part = jnp.max(xb, axis=1)                     # (TB, H, W)

    @pl.when(ci == 0)
    def _init():
        sum_ref[...] = jnp.zeros(sum_ref.shape, sum_ref.dtype)   # zero halo
        max_ref[...] = jnp.zeros(max_ref.shape, max_ref.dtype)
        sum_ref[:, pad:pad + h, pad:pad + w] = s_part
        max_ref[:, pad:pad + h, pad:pad + w] = m_part

    @pl.when(ci > 0)
    def _accumulate():
        sum_ref[:, pad:pad + h, pad:pad + w] += s_part
        max_ref[:, pad:pad + h, pad:pad + w] = jnp.maximum(
            max_ref[:, pad:pad + h, pad:pad + w], m_part)

    @pl.when(ci == n_c - 1)
    def _finalize():
        # Running sum -> mean (the zero halo stays zero: 0 / C == 0).
        sum_ref[...] = sum_ref[...] * jnp.float32(1.0 / c_total)

        # Unrolled k*k tap accumulation on the VPU.  Each tap reads a (TB,H,W) window
        # of the padded avg / max maps straight from VMEM scratch at a static offset,
        # so only the accumulator and two small windows are live in vregs.
        acc = jnp.zeros(o_ref.shape, jnp.float32)
        for ki in range(k):
            for kj in range(k):
                a_win = sum_ref[:, ki:ki + h, kj:kj + w]          # avg window
                m_win = max_ref[:, ki:ki + h, kj:kj + w]          # max window
                acc = (acc
                       + w_ref[ki * k + kj] * a_win               # conv in-chan 0: avg
                       + w_ref[k * k + ki * k + kj] * m_win)      # conv in-chan 1: max

        # sigmoid(acc); exact reciprocal keeps accuracy while avoiding a VALU divide.
        o_ref[...] = pl.reciprocal(1.0 + jnp.exp(-acc),
                                   approx=False).astype(o_ref.dtype)


def spatial_attention(x, weight, kernel_size=7):
    """x: (B, C, H, W); weight: (1, 2, k, k) PyTorch OIHW layout, bias-free.
    Returns sigmoid(conv2d(cat([mean_c(x), max_c(x)], 1), weight)): (B, 1, H, W)."""
    assert kernel_size in (3, 7), "kernel size must be 3 or 7"
    pad = 3 if kernel_size == 7 else 1
    b, c, h, w = x.shape
    hp, wp = h + 2 * pad, w + 2 * pad

    # Channel tile: bounds per-step block size (VMEM / vreg pressure); the channel grid
    # axis handles arbitrary C.
    tc = _largest_divisor_leq(c, 8)
    # Batch tile: grow DMA blocks toward ~1 MiB to amortize per-step overhead, but keep
    # >= 2 batch blocks when B >= 2 so both v7x TensorCores get work.
    tb_cap = max(1, (1 << 20) // max(1, tc * h * w * x.dtype.itemsize))
    if b >= 2:
        tb_cap = min(tb_cap, b // 2)
    tb = _largest_divisor_leq(b, tb_cap)

    w_flat = weight.astype(jnp.float32).reshape(-1)   # (2*k*k,), (chan, ki, kj) order

    kernel = functools.partial(_spatial_attention_kernel, k=kernel_size, pad=pad,
                               h=h, w=w, c_total=c)
    out = pl.pallas_call(
        kernel,
        grid=(b // tb, c // tc),
        in_specs=[
            pl.BlockSpec((tb, tc, h, w), lambda i, ci: (i, ci, 0, 0)),
            pl.BlockSpec(memory_space=pltpu.MemorySpace.SMEM),
        ],
        out_specs=pl.BlockSpec((tb, h, w), lambda i, ci: (i, 0, 0)),
        out_shape=jax.ShapeDtypeStruct((b, h, w), x.dtype),
        scratch_shapes=[pltpu.VMEM((tb, hp, wp), jnp.float32),
                        pltpu.VMEM((tb, hp, wp), jnp.float32)],
        compiler_params=pltpu.CompilerParams(
            dimension_semantics=("parallel", "arbitrary"),
            vmem_limit_bytes=32 * 1024 * 1024),
    )(x, w_flat)
    return out.reshape(b, 1, h, w)


def spatial_attention_ref(x, weight, kernel_size=7):
    """Plain-JAX reference mirroring the PyTorch module exactly."""
    pad = 3 if kernel_size == 7 else 1
    avg = jnp.mean(x, axis=1, keepdims=True)
    mx = jnp.max(x, axis=1, keepdims=True)
    feat = jnp.concatenate([avg, mx], axis=1)          # (B, 2, H, W)
    y = jax.lax.conv_general_dilated(
        feat, weight, window_strides=(1, 1),
        padding=((pad, pad), (pad, pad)),
        dimension_numbers=("NCHW", "OIHW", "NCHW"))
    return jax.nn.sigmoid(y)


if __name__ == "__main__":
    key = jax.random.PRNGKey(0)
    kx, kw = jax.random.split(key)

    kernel_size = 7
    x = jax.random.normal(kx, (2, 4, 16, 16), jnp.float32)           # (B, C, H, W)
    fan_in = 2 * kernel_size * kernel_size
    weight = jax.random.normal(kw, (1, 2, kernel_size, kernel_size),
                               jnp.float32) / math.sqrt(fan_in)       # OIHW, no bias

    out = jax.block_until_ready(spatial_attention(x, weight, kernel_size))
    ref = spatial_attention_ref(x, weight, kernel_size)

    assert out.shape == (2, 1, 16, 16), out.shape
    assert bool(jnp.all(jnp.isfinite(out)))
    assert bool(jnp.allclose(out, ref, atol=1e-5, rtol=1e-5)), float(
        jnp.max(jnp.abs(out - ref)))
    print("KERNEL_OK")
</pallas_src>

<mosaic_0001>
module attributes {stable_mosaic.version = 11 : i64} {
  func.func @_spatial_attention_kernel(%arg0: i32, %arg1: i32, %arg2: memref<1x4x16x16xf32, #tpu.memory_space<vmem>>, %arg3: memref<98xf32, #tpu.memory_space<smem>>, %arg4: memref<1x16x16xf32, #tpu.memory_space<vmem>>, %arg5: memref<1x22x22xf32, #tpu.memory_space<vmem>>, %arg6: memref<1x22x22xf32, #tpu.memory_space<vmem>>) attributes {dimension_semantics = [#tpu.dimension_semantics<parallel>, #tpu.dimension_semantics<arbitrary>], iteration_bounds = array<i64: 2, 1>, scalar_prefetch = 0 : i64, scratch_operands = 2 : i64, tpu.core_type = #tpu.core_type<tc>, window_params = [{transform_indices = @transform_0, window_bounds = array<i64: 1, 4, 16, 16>}, {transform_indices = @transform_1, window_bounds = array<i64: 98>}, {transform_indices = @transform_2, window_bounds = array<i64: 1, 16, 16>}]} {
    %c0 = arith.constant 0 : index
    %c0_0 = arith.constant 0 : index
    %c0_1 = arith.constant 0 : index
    %c0_2 = arith.constant 0 : index
    %0 = vector.load %arg2[%c0, %c0_0, %c0_1, %c0_2] : memref<1x4x16x16xf32, #tpu.memory_space<vmem>>, vector<1x4x16x16xf32>
    %cst = arith.constant dense<0.000000e+00> : vector<1x16x16xf32>
    %1 = vector.multi_reduction <add>, %0, %cst [1] : vector<1x4x16x16xf32> to vector<1x16x16xf32>
    %cst_3 = arith.constant dense<0xFF800000> : vector<1x16x16xf32>
    %2 = vector.multi_reduction <maximumf>, %0, %cst_3 [1] : vector<1x4x16x16xf32> to vector<1x16x16xf32>
    %c0_i32 = arith.constant 0 : i32
    %3 = arith.cmpi eq, %arg1, %c0_i32 : i32
    %4 = arith.extui %3 : i1 to i32
    %c0_i32_4 = arith.constant 0 : i32
    %5 = arith.cmpi ne, %4, %c0_i32_4 : i32
    scf.if %5 {
      %cst_9 = arith.constant 0.000000e+00 : f32
      %12 = vector.broadcast %cst_9 : f32 to vector<1x22x22xf32>
      %c0_10 = arith.constant 0 : index
      %c0_11 = arith.constant 0 : index
      %c0_12 = arith.constant 0 : index
      %13 = vector.load %arg5[%c0_10, %c0_11, %c0_12] : memref<1x22x22xf32, #tpu.memory_space<vmem>>, vector<1x22x22xf32>
      tpu.vector_store %arg5[%c0_10, %c0_11, %c0_12], %12 {strides = array<i32>} : memref<1x22x22xf32, #tpu.memory_space<vmem>>, vector<1x22x22xf32>,
      %cst_13 = arith.constant 0.000000e+00 : f32
      %14 = vector.broadcast %cst_13 : f32 to vector<1x22x22xf32>
      %c0_14 = arith.constant 0 : index
      %c0_15 = arith.constant 0 : index
      %c0_16 = arith.constant 0 : index
      %15 = vector.load %arg6[%c0_14, %c0_15, %c0_16] : memref<1x22x22xf32, #tpu.memory_space<vmem>>, vector<1x22x22xf32>
      tpu.vector_store %arg6[%c0_14, %c0_15, %c0_16], %14 {strides = array<i32>} : memref<1x22x22xf32, #tpu.memory_space<vmem>>, vector<1x22x22xf32>,
      %c0_17 = arith.constant 0 : index
      %c3 = arith.constant 3 : index
      %c3_18 = arith.constant 3 : index
      %16 = vector.load %arg5[%c0_17, %c3, %c3_18] : memref<1x22x22xf32, #tpu.memory_space<vmem>>, vector<1x16x16xf32>
      tpu.vector_store %arg5[%c0_17, %c3, %c3_18], %1 {strides = array<i32>} : memref<1x22x22xf32, #tpu.memory_space<vmem>>, vector<1x16x16xf32>,
      %c0_19 = arith.constant 0 : index
      %c3_20 = arith.constant 3 : index
      %c3_21 = arith.constant 3 : index
      %17 = vector.load %arg6[%c0_19, %c3_20, %c3_21] : memref<1x22x22xf32, #tpu.memory_space<vmem>>, vector<1x16x16xf32>
      tpu.vector_store %arg6[%c0_19, %c3_20, %c3_21], %2 {strides = array<i32>} : memref<1x22x22xf32, #tpu.memory_space<vmem>>, vector<1x16x16xf32>,
    } else {
    }
    %c0_i32_5 = arith.constant 0 : i32
    %6 = arith.cmpi sgt, %arg1, %c0_i32_5 : i32
    %7 = arith.extui %6 : i1 to i32
    %c0_i32_6 = arith.constant 0 : i32
    %8 = arith.cmpi ne, %7, %c0_i32_6 : i32
    scf.if %8 {
      %c0_9 = arith.constant 0 : index
      %c3 = arith.constant 3 : index
      %c3_10 = arith.constant 3 : index
      %12 = vector.load %arg5[%c0_9, %c3, %c3_10] : memref<1x22x22xf32, #tpu.memory_space<vmem>>, vector<1x16x16xf32>
      %13 = arith.addf %12, %1 : vector<1x16x16xf32>
      %c0_11 = arith.constant 0 : index
      %c3_12 = arith.constant 3 : index
      %c3_13 = arith.constant 3 : index
      %14 = vector.load %arg5[%c0_11, %c3_12, %c3_13] : memref<1x22x22xf32, #tpu.memory_space<vmem>>, vector<1x16x16xf32>
      tpu.vector_store %arg5[%c0_11, %c3_12, %c3_13], %13 {strides = array<i32>} : memref<1x22x22xf32, #tpu.memory_space<vmem>>, vector<1x16x16xf32>,
      %c0_14 = arith.constant 0 : index
      %c3_15 = arith.constant 3 : index
      %c3_16 = arith.constant 3 : index
      %15 = vector.load %arg6[%c0_14, %c3_15, %c3_16] : memref<1x22x22xf32, #tpu.memory_space<vmem>>, vector<1x16x16xf32>
      %16 = arith.maximumf %15, %2 : vector<1x16x16xf32>
      %c0_17 = arith.constant 0 : index
      %c3_18 = arith.constant 3 : index
      %c3_19 = arith.constant 3 : index
      %17 = vector.load %arg6[%c0_17, %c3_18, %c3_19] : memref<1x22x22xf32, #tpu.memory_space<vmem>>, vector<1x16x16xf32>
      tpu.vector_store %arg6[%c0_17, %c3_18, %c3_19], %16 {strides = array<i32>} : memref<1x22x22xf32, #tpu.memory_space<vmem>>, vector<1x16x16xf32>,
    } else {
    }
    %c0_i32_7 = arith.constant 0 : i32
    %9 = arith.cmpi eq, %arg1, %c0_i32_7 : i32
    %10 = arith.extui %9 : i1 to i32
    %c0_i32_8 = arith.constant 0 : i32
    %11 = arith.cmpi ne, %10, %c0_i32_8 : i32
    scf.if %11 {
      %c0_9 = arith.constant 0 : index
      %c0_10 = arith.constant 0 : index
      %c0_11 = arith.constant 0 : index
      %12 = vector.load %arg5[%c0_9, %c0_10, %c0_11] : memref<1x22x22xf32, #tpu.memory_space<vmem>>, vector<1x22x22xf32>
      %cst_12 = arith.constant 2.500000e-01 : f32
      %13 = vector.broadcast %cst_12 : f32 to vector<1x22x22xf32>
      %14 = arith.mulf %12, %13 : vector<1x22x22xf32>
      %c0_13 = arith.constant 0 : index
      %c0_14 = arith.constant 0 : index
      %c0_15 = arith.constant 0 : index
      %15 = vector.load %arg5[%c0_13, %c0_14, %c0_15] : memref<1x22x22xf32, #tpu.memory_space<vmem>>, vector<1x22x22xf32>
      tpu.vector_store %arg5[%c0_13, %c0_14, %c0_15], %14 {strides = array<i32>} : memref<1x22x22xf32, #tpu.memory_space<vmem>>, vector<1x22x22xf32>,
      %cst_16 = arith.constant 0.000000e+00 : f32
      %16 = vector.broadcast %cst_16 : f32 to vector<1x16x16xf32>
      %c0_17 = arith.constant 0 : index
      %c0_18 = arith.constant 0 : index
      %c0_19 = arith.constant 0 : index
      %17 = vector.load %arg5[%c0_17, %c0_18, %c0_19] : memref<1x22x22xf32, #tpu.memory_space<vmem>>, vector<1x16x16xf32>
      %c0_20 = arith.constant 0 : index
      %c0_21 = arith.constant 0 : index
      %c0_22 = arith.constant 0 : index
      %18 = vector.load %arg6[%c0_20, %c0_21, %c0_22] : memref<1x22x22xf32, #tpu.memory_space<vmem>>, vector<1x16x16xf32>
      %c0_23 = arith.constant 0 : index
      %19 = memref.load %arg3[%c0_23] : memref<98xf32, #tpu.memory_space<smem>>
      %20 = vector.broadcast %19 : f32 to vector<1x16x16xf32>
      %21 = arith.mulf %20, %17 : vector<1x16x16xf32>
      %22 = arith.addf %16, %21 : vector<1x16x16xf32>
      %c49 = arith.constant 49 : index
      %23 = memref.load %arg3[%c49] : memref<98xf32, #tpu.memory_space<smem>>
      %24 = vector.broadcast %23 : f32 to vector<1x16x16xf32>
      %25 = arith.mulf %24, %18 : vector<1x16x16xf32>
      %26 = arith.addf %22, %25 : vector<1x16x16xf32>
      %c0_24 = arith.constant 0 : index
      %c0_25 = arith.constant 0 : index
      %c1 = arith.constant 1 : index
      %27 = vector.load %arg5[%c0_24, %c0_25, %c1] : memref<1x22x22xf32, #tpu.memory_space<vmem>>, vector<1x16x16xf32>
      %c0_26 = arith.constant 0 : index
      %c0_27 = arith.constant 0 : index
      %c1_28 = arith.constant 1 : index
      %28 = vector.load %arg6[%c0_26, %c0_27, %c1_28] : memref<1x22x22xf32, #tpu.memory_space<vmem>>, vector<1x16x16xf32>
      %c1_29 = arith.constant 1 : index
      %29 = memref.load %arg3[%c1_29] : memref<98xf32, #tpu.memory_space<smem>>
      %30 = vector.broadcast %29 : f32 to vector<1x16x16xf32>
      %31 = arith.mulf %30, %27 : vector<1x16x16xf32>
      %32 = arith.addf %26, %31 : vector<1x16x16xf32>
      %c50 = arith.constant 50 : index
      %33 = memref.load %arg3[%c50] : memref<98xf32, #tpu.memory_space<smem>>
      %34 = vector.broadcast %33 : f32 to vector<1x16x16xf32>
      %35 = arith.mulf %34, %28 : vector<1x16x16xf32>
      %36 = arith.addf %32, %35 : vector<1x16x16xf32>
      %c0_30 = arith.constant 0 : index
      %c0_31 = arith.constant 0 : index
      %c2 = arith.constant 2 : index
      %37 = vector.load %arg5[%c0_30, %c0_31, %c2] : memref<1x22x22xf32, #tpu.memory_space<vmem>>, vector<1x16x16xf32>
      %c0_32 = arith.constant 0 : index
      %c0_33 = arith.constant 0 : index
      %c2_34 = arith.constant 2 : index
      %38 = vector.load %arg6[%c0_32, %c0_33, %c2_34] : memref<1x22x22xf32, #tpu.memory_space<vmem>>, vector<1x16x16xf32>
      %c2_35 = arith.constant 2 : index
      %39 = memref.load %arg3[%c2_35] : memref<98xf32, #tpu.memory_space<smem>>
      %40 = vector.broadcast %39 : f32 to vector<1x16x16xf32>
      %41 = arith.mulf %40, %37 : vector<1x16x16xf32>
      %42 = arith.addf %36, %41 : vector<1x16x16xf32>
      %c51 = arith.constant 51 : index
      %43 = memref.load %arg3[%c51] : memref<98xf32, #tpu.memory_space<smem>>
      %44 = vector.broadcast %43 : f32 to vector<1x16x16xf32>
      %45 = arith.mulf %44, %38 : vector<1x16x16xf32>
      %46 = arith.addf %42, %45 : vector<1x16x16xf32>
      %c0_36 = arith.constant 0 : index
      %c0_37 = arith.constant 0 : index
      %c3 = arith.constant 3 : index
      %47 = vector.load %arg5[%c0_36, %c0_37, %c3] : memref<1x22x22xf32, #tpu.memory_space<vmem>>, vector<1x16x16xf32>
      %c0_38 = arith.constant 0 : index
      %c0_39 = arith.constant 0 : index
      %c3_40 = arith.constant 3 : index
      %48 = vector.load %arg6[%c0_38, %c0_39, %c3_40] : memref<1x22x22xf32, #tpu.memory_space<vmem>>, vector<1x16x16xf32>
      %c3_41 = arith.constant 3 : index
      %49 = memref.load %arg3[%c3_41] : memref<98xf32, #tpu.memory_space<smem>>
      %50 = vector.broadcast %49 : f32 to vector<1x16x16xf32>
      %51 = arith.mulf %50, %47 : vector<1x16x16xf32>
      %52 = arith.addf %46, %51 : vector<1x16x16xf32>
      %c52 = arith.constant 52 : index
      %53 = memref.load %arg3[%c52] : memref<98xf32, #tpu.memory_space<smem>>
      %54 = vector.broadcast %53 : f32 to vector<1x16x16xf32>
      %55 = arith.mulf %54, %48 : vector<1x16x16xf32>
      %56 = arith.addf %52, %55 : vector<1x16x16xf32>
      %c0_42 = arith.constant 0 : index
      %c0_43 = arith.constant 0 : index
      %c4 = arith.constant 4 : index
      %57 = vector.load %arg5[%c0_42, %c0_43, %c4] : memref<1x22x22xf32, #tpu.memory_space<vmem>>, vector<1x16x16xf32>
      %c0_44 = arith.constant 0 : index
      %c0_45 = arith.constant 0 : index
      %c4_46 = arith.constant 4 : index
      %58 = vector.load %arg6[%c0_44, %c0_45, %c4_46] : memref<1x22x22xf32, #tpu.memory_space<vmem>>, vector<1x16x16xf32>
      %c4_47 = arith.constant 4 : index
      %59 = memref.load %arg3[%c4_47] : memref<98xf32, #tpu.memory_space<smem>>
      %60 = vector.broadcast %59 : f32 to vector<1x16x16xf32>
      %61 = arith.mulf %60, %57 : vector<1x16x16xf32>
      %62 = arith.addf %56, %61 : vector<1x16x16xf32>
      %c53 = arith.constant 53 : index
      %63 = memref.load %arg3[%c53] : memref<98xf32, #tpu.memory_space<smem>>
      %64 = vector.broadcast %63 : f32 to vector<1x16x16xf32>
      %65 = arith.mulf %64, %58 : vector<1x16x16xf32>
      %66 = arith.addf %62, %65 : vector<1x16x16xf32>
      %c0_48 = arith.constant 0 : index
      %c0_49 = arith.constant 0 : index
      %c5 = arith.constant 5 : index
      %67 = vector.load %arg5[%c0_48, %c0_49, %c5] : memref<1x22x22xf32, #tpu.memory_space<vmem>>, vector<1x16x16xf32>
      %c0_50 = arith.constant 0 : index
      %c0_51 = arith.constant 0 : index
      %c5_52 = arith.constant 5 : index
      %68 = vector.load %arg6[%c0_50, %c0_51, %c5_52] : memref<1x22x22xf32, #tpu.memory_space<vmem>>, vector<1x16x16xf32>
      %c5_53 = arith.constant 5 : index
      %69 = memref.load %arg3[%c5_53] : memref<98xf32, #tpu.memory_space<smem>>
      %70 = vector.broadcast %69 : f32 to vector<1x16x16xf32>
      %71 = arith.mulf %70, %67 : vector<1x16x16xf32>
      %72 = arith.addf %66, %71 : vector<1x16x16xf32>
      %c54 = arith.constant 54 : index
      %73 = memref.load %arg3[%c54] : memref<98xf32, #tpu.memory_space<smem>>
      %74 = vector.broadcast %73 : f32 to vector<1x16x16xf32>
      %75 = arith.mulf %74, %68 : vector<1x16x16xf32>
      %76 = arith.addf %72, %75 : vector<1x16x16xf32>
      %c0_54 = arith.constant 0 : index
      %c0_55 = arith.constant 0 : index
      %c6 = arith.constant 6 : index
      %77 = vector.load %arg5[%c0_54, %c0_55, %c6] : memref<1x22x22xf32, #tpu.memory_space<vmem>>, vector<1x16x16xf32>
      %c0_56 = arith.constant 0 : index
      %c0_57 = arith.constant 0 : index
      %c6_58 = arith.constant 6 : index
      %78 = vector.load %arg6[%c0_56, %c0_57, %c6_58] : memref<1x22x22xf32, #tpu.memory_space<vmem>>, vector<1x16x16xf32>
      %c6_59 = arith.constant 6 : index
      %79 = memref.load %arg3[%c6_59] : memref<98xf32, #tpu.memory_space<smem>>
      %80 = vector.broadcast %79 : f32 to vector<1x16x16xf32>
      %81 = arith.mulf %80, %77 : vector<1x16x16xf32>
      %82 = arith.addf %76, %81 : vector<1x16x16xf32>
      %c55 = arith.constant 55 : index
      %83 = memref.load %arg3[%c55] : memref<98xf32, #tpu.memory_space<smem>>
      %84 = vector.broadcast %83 : f32 to vector<1x16x16xf32>
      %85 = arith.mulf %84, %78 : vector<1x16x16xf32>
      %86 = arith.addf %82, %85 : vector<1x16x16xf32>
      %c0_60 = arith.constant 0 : index
      %c1_61 = arith.constant 1 : index
      %c0_62 = arith.constant 0 : index
      %87 = vector.load %arg5[%c0_60, %c1_61, %c0_62] : memref<1x22x22xf32, #tpu.memory_space<vmem>>, vector<1x16x16xf32>
      %c0_63 = arith.constant 0 : index
      %c1_64 = arith.constant 1 : index
      %c0_65 = arith.constant 0 : index
      %88 = vector.load %arg6[%c0_63, %c1_64, %c0_65] : memref<1x22x22xf32, #tpu.memory_space<vmem>>, vector<1x16x16xf32>
      %c7 = arith.constant 7 : index
      %89 = memref.load %arg3[%c7] : memref<98xf32, #tpu.memory_space<smem>>
      %90 = vector.broadcast %89 : f32 to vector<1x16x16xf32>
      %91 = arith.mulf %90, %87 : vector<1x16x16xf32>
      %92 = arith.addf %86, %91 : vector<1x16x16xf32>
      %c56 = arith.constant 56 : index
      %93 = memref.load %arg3[%c56] : memref<98xf32, #tpu.memory_space<smem>>
      %94 = vector.broadcast %93 : f32 to vector<1x16x16xf32>
      %95 = arith.mulf %94, %88 : vector<1x16x16xf32>
      %96 = arith.addf %92, %95 : vector<1x16x16xf32>
      %c0_66 = arith.constant 0 : index
      %c1_67 = arith.constant 1 : index
      %c1_68 = arith.constant 1 : index
      %97 = vector.load %arg5[%c0_66, %c1_67, %c1_68] : memref<1x22x22xf32, #tpu.memory_space<vmem>>, vector<1x16x16xf32>
      %c0_69 = arith.constant 0 : index
      %c1_70 = arith.constant 1 : index
      %c1_71 = arith.constant 1 : index
      %98 = vector.load %arg6[%c0_69, %c1_70, %c1_71] : memref<1x22x22xf32, #tpu.memory_space<vmem>>, vector<1x16x16xf32>
      %c8 = arith.constant 8 : index
      %99 = memref.load %arg3[%c8] : memref<98xf32, #tpu.memory_space<smem>>
      %100 = vector.broadcast %99 : f32 to vector<1x16x16xf32>
      %101 = arith.mulf %100, %97 : vector<1x16x16xf32>
      %102 = arith.addf %96, %101 : vector<1x16x16xf32>
      %c57 = arith.constant 57 : index
      %103 = memref.load %arg3[%c57] : memref<98xf32, #tpu.memory_space<smem>>
      %104 = vector.broadcast %103 : f32 to vector<1x16x16xf32>
      %105 = arith.mulf %104, %98 : vector<1x16x16xf32>
      %106 = arith.addf %102, %105 : vector<1x16x16xf32>
      %c0_72 = arith.constant 0 : index
      %c1_73 = arith.constant 1 : index
      %c2_74 = arith.constant 2 : index
      %107 = vector.load %arg5[%c0_72, %c1_73, %c2_74] : memref<1x22x22xf32, #tpu.memory_space<vmem>>, vector<1x16x16xf32>
      %c0_75 = arith.constant 0 : index
      %c1_76 = arith.constant 1 : index
      %c2_77 = arith.constant 2 : index
      %108 = vector.load %arg6[%c0_75, %c1_76, %c2_77] : memref<1x22x22xf32, #tpu.memory_space<vmem>>, vector<1x16x16xf32>
      %c9 = arith.constant 9 : index
      %109 = memref.load %arg3[%c9] : memref<98xf32, #tpu.memory_space<smem>>
      %110 = vector.broadcast %109 : f32 to vector<1x16x16xf32>
      %111 = arith.mulf %110, %107 : vector<1x16x16xf32>
      %112 = arith.addf %106, %111 : vector<1x16x16xf32>
      %c58 = arith.constant 58 : index
      %113 = memref.load %arg3[%c58] : memref<98xf32, #tpu.memory_space<smem>>
      %114 = vector.broadcast %113 : f32 to vector<1x16x16xf32>
      %115 = arith.mulf %114, %108 : vector<1x16x16xf32>
      %116 = arith.addf %112, %115 : vector<1x16x16xf32>
      %c0_78 = arith.constant 0 : index
      %c1_79 = arith.constant 1 : index
      %c3_80 = arith.constant 3 : index
      %117 = vector.load %arg5[%c0_78, %c1_79, %c3_80] : memref<1x22x22xf32, #tpu.memory_space<vmem>>, vector<1x16x16xf32>
      %c0_81 = arith.constant 0 : index
      %c1_82 = arith.constant 1 : index
      %c3_83 = arith.constant 3 : index
      %118 = vector.load %arg6[%c0_81, %c1_82, %c3_83] : memref<1x22x22xf32, #tpu.memory_space<vmem>>, vector<1x16x16xf32>
      %c10 = arith.constant 10 : index
      %119 = memref.load %arg3[%c10] : memref<98xf32, #tpu.memory_space<smem>>
      %120 = vector.broadcast %119 : f32 to vector<1x16x16xf32>
      %121 = arith.mulf %120, %117 : vector<1x16x16xf32>
      %122 = arith.addf %116, %121 : vector<1x16x16xf32>
      %c59 = arith.constant 59 : index
      %123 = memref.load %arg3[%c59] : memref<98xf32, #tpu.memory_space<smem>>
      %124 = vector.broadcast %123 : f32 to vector<1x16x16xf32>
      %125 = arith.mulf %124, %118 : vector<1x16x16xf32>
      %126 = arith.addf %122, %125 : vector<1x16x16xf32>
      %c0_84 = arith.constant 0 : index
      %c1_85 = arith.constant 1 : index
      %c4_86 = arith.constant 4 : index
      %127 = vector.load %arg5[%c0_84, %c1_85, %c4_86] : memref<1x22x22xf32, #tpu.memory_space<vmem>>, vector<1x16x16xf32>
      %c0_87 = arith.constant 0 : index
      %c1_88 = arith.constant 1 : index
      %c4_89 = arith.constant 4 : index
      %128 = vector.load %arg6[%c0_87, %c1_88, %c4_89] : memref<1x22x22xf32, #tpu.memory_space<vmem>>, vector<1x16x16xf32>
      %c11 = arith.constant 11 : index
      %129 = memref.load %arg3[%c11] : memref<98xf32, #tpu.memory_space<smem>>
      %130 = vector.broadcast %129 : f32 to vector<1x16x16xf32>
      %131 = arith.mulf %130, %127 : vector<1x16x16xf32>
      %132 = arith.addf %126, %131 : vector<1x16x16xf32>
      %c60 = arith.constant 60 : index
      %133 = memref.load %arg3[%c60] : memref<98xf32, #tpu.memory_space<smem>>
      %134 = vector.broadcast %133 : f32 to vector<1x16x16xf32>
      %135 = arith.mulf %134, %128 : vector<1x16x16xf32>
      %136 = arith.addf %132, %135 : vector<1x16x16xf32>
      %c0_90 = arith.constant 0 : index
      %c1_91 = arith.constant 1 : index
      %c5_92 = arith.constant 5 : index
      %137 = vector.load %arg5[%c0_90, %c1_91, %c5_92] : memref<1x22x22xf32, #tpu.memory_space<vmem>>, vector<1x16x16xf32>
      %c0_93 = arith.constant 0 : index
      %c1_94 = arith.constant 1 : index
      %c5_95 = arith.constant 5 : index
      %138 = vector.load %arg6[%c0_93, %c1_94, %c5_95] : memref<1x22x22xf32, #tpu.memory_space<vmem>>, vector<1x16x16xf32>
      %c12 = arith.constant 12 : index
      %139 = memref.load %arg3[%c12] : memref<98xf32, #tpu.memory_space<smem>>
      %140 = vector.broadcast %139 : f32 to vector<1x16x16xf32>
      %141 = arith.mulf %140, %137 : vector<1x16x16xf32>
      %142 = arith.addf %136, %141 : vector<1x16x16xf32>
      %c61 = arith.constant 61 : index
      %143 = memref.load %arg3[%c61] : memref<98xf32, #tpu.memory_space<smem>>
      %144 = vector.broadcast %143 : f32 to vector<1x16x16xf32>
      %145 = arith.mulf %144, %138 : vector<1x16x16xf32>
      %146 = arith.addf %142, %145 : vector<1x16x16xf32>
      %c0_96 = arith.constant 0 : index
      %c1_97 = arith.constant 1 : index
      %c6_98 = arith.constant 6 : index
      %147 = vector.load %arg5[%c0_96, %c1_97, %c6_98] : memref<1x22x22xf32, #tpu.memory_space<vmem>>, vector<1x16x16xf32>
      %c0_99 = arith.constant 0 : index
      %c1_100 = arith.constant 1 : index
      %c6_101 = arith.constant 6 : index
      %148 = vector.load %arg6[%c0_99, %c1_100, %c6_101] : memref<1x22x22xf32, #tpu.memory_space<vmem>>, vector<1x16x16xf32>
      %c13 = arith.constant 13 : index
      %149 = memref.load %arg3[%c13] : memref<98xf32, #tpu.memory_space<smem>>
      %150 = vector.broadcast %149 : f32 to vector<1x16x16xf32>
      %151 = arith.mulf %150, %147 : vector<1x16x16xf32>
      %152 = arith.addf %146, %151 : vector<1x16x16xf32>
      %c62 = arith.constant 62 : index
      %153 = memref.load %arg3[%c62] : memref<98xf32, #tpu.memory_space<smem>>
      %154 = vector.broadcast %153 : f32 to vector<1x16x16xf32>
      %155 = arith.mulf %154, %148 : vector<1x16x16xf32>
      %156 = arith.addf %152, %155 : vector<1x16x16xf32>
      %c0_102 = arith.constant 0 : index
      %c2_103 = arith.constant 2 : index
      %c0_104 = arith.constant 0 : index
      %157 = vector.load %arg5[%c0_102, %c2_103, %c0_104] : memref<1x22x22xf32, #tpu.memory_space<vmem>>, vector<1x16x16xf32>
      %c0_105 = arith.constant 0 : index
      %c2_106 = arith.constant 2 : index
      %c0_107 = arith.constant 0 : index
      %158 = vector.load %arg6[%c0_105, %c2_106, %c0_107] : memref<1x22x22xf32, #tpu.memory_space<vmem>>, vector<1x16x16xf32>
      %c14 = arith.constant 14 : index
      %159 = memref.load %arg3[%c14] : memref<98xf32, #tpu.memory_space<smem>>
      %160 = vector.broadcast %159 : f32 to vector<1x16x16xf32>
      %161 = arith.mulf %160, %157 : vector<1x16x16xf32>
      %162 = arith.addf %156, %161 : vector<1x16x16xf32>
      %c63 = arith.constant 63 : index
      %163 = memref.load %arg3[%c63] : memref<98xf32, #tpu.memory_space<smem>>
      %164 = vector.broadcast %163 : f32 to vector<1x16x16xf32>
      %165 = arith.mulf %164, %158 : vector<1x16x16xf32>
      %166 = arith.addf %162, %165 : vector<1x16x16xf32>
      %c0_108 = arith.constant 0 : index
      %c2_109 = arith.constant 2 : index
      %c1_110 = arith.constant 1 : index
      %167 = vector.load %arg5[%c0_108, %c2_109, %c1_110] : memref<1x22x22xf32, #tpu.memory_space<vmem>>, vector<1x16x16xf32>
      %c0_111 = arith.constant 0 : index
      %c2_112 = arith.constant 2 : index
      %c1_113 = arith.constant 1 : index
      %168 = vector.load %arg6[%c0_111, %c2_112, %c1_113] : memref<1x22x22xf32, #tpu.memory_space<vmem>>, vector<1x16x16xf32>
      %c15 = arith.constant 15 : index
      %169 = memref.load %arg3[%c15] : memref<98xf32, #tpu.memory_space<smem>>
      %170 = vector.broadcast %169 : f32 to vector<1x16x16xf32>
      %171 = arith.mulf %170, %167 : vector<1x16x16xf32>
      %172 = arith.addf %166, %171 : vector<1x16x16xf32>
      %c64 = arith.constant 64 : index
      %173 = memref.load %arg3[%c64] : memref<98xf32, #tpu.memory_space<smem>>
      %174 = vector.broadcast %173 : f32 to vector<1x16x16xf32>
      %175 = arith.mulf %174, %168 : vector<1x16x16xf32>
      %176 = arith.addf %172, %175 : vector<1x16x16xf32>
      %c0_114 = arith.constant 0 : index
      %c2_115 = arith.constant 2 : index
      %c2_116 = arith.constant 2 : index
      %177 = vector.load %arg5[%c0_114, %c2_115, %c2_116] : memref<1x22x22xf32, #tpu.memory_space<vmem>>, vector<1x16x16xf32>
      %c0_117 = arith.constant 0 : index
      %c2_118 = arith.constant 2 : index
      %c2_119 = arith.constant 2 : index
      %178 = vector.load %arg6[%c0_117, %c2_118, %c2_119] : memref<1x22x22xf32, #tpu.memory_space<vmem>>, vector<1x16x16xf32>
      %c16 = arith.constant 16 : index
      %179 = memref.load %arg3[%c16] : memref<98xf32, #tpu.memory_space<smem>>
      %180 = vector.broadcast %179 : f32 to vector<1x16x16xf32>
      %181 = arith.mulf %180, %177 : vector<1x16x16xf32>
      %182 = arith.addf %176, %181 : vector<1x16x16xf32>
      %c65 = arith.constant 65 : index
      %183 = memref.load %arg3[%c65] : memref<98xf32, #tpu.memory_space<smem>>
      %184 = vector.broadcast %183 : f32 to vector<1x16x16xf32>
      %185 = arith.mulf %184, %178 : vector<1x16x16xf32>
      %186 = arith.addf %182, %185 : vector<1x16x16xf32>
      %c0_120 = arith.constant 0 : index
      %c2_121 = arith.constant 2 : index
      %c3_122 = arith.constant 3 : index
      %187 = vector.load %arg5[%c0_120, %c2_121, %c3_122] : memref<1x22x22xf32, #tpu.memory_space<vmem>>, vector<1x16x16xf32>
      %c0_123 = arith.constant 0 : index
      %c2_124 = arith.constant 2 : index
      %c3_125 = arith.constant 3 : index
      %188 = vector.load %arg6[%c0_123, %c2_124, %c3_125] : memref<1x22x22xf32, #tpu.memory_space<vmem>>, vector<1x16x16xf32>
      %c17 = arith.constant 17 : index
      %189 = memref.load %arg3[%c17] : memref<98xf32, #tpu.memory_space<smem>>
      %190 = vector.broadcast %189 : f32 to vector<1x16x16xf32>
      %191 = arith.mulf %190, %187 : vector<1x16x16xf32>
      %192 = arith.addf %186, %191 : vector<1x16x16xf32>
      %c66 = arith.constant 66 : index
      %193 = memref.load %arg3[%c66] : memref<98xf32, #tpu.memory_space<smem>>
      %194 = vector.broadcast %193 : f32 to vector<1x16x16xf32>
      %195 = arith.mulf %194, %188 : vector<1x16x16xf32>
      %196 = arith.addf %192, %195 : vector<1x16x16xf32>
      %c0_126 = arith.constant 0 : index
      %c2_127 = arith.constant 2 : index
      %c4_128 = arith.constant 4 : index
      %197 = vector.load %arg5[%c0_126, %c2_127, %c4_128] : memref<1x22x22xf32, #tpu.memory_space<vmem>>, vector<1x16x16xf32>
      %c0_129 = arith.constant 0 : index
      %c2_130 = arith.constant 2 : index
      %c4_131 = arith.constant 4 : index
      %198 = vector.load %arg6[%c0_129, %c2_130, %c4_131] : memref<1x22x22xf32, #tpu.memory_space<vmem>>, vector<1x16x16xf32>
      %c18 = arith.constant 18 : index
      %199 = memref.load %arg3[%c18] : memref<98xf32, #tpu.memory_space<smem>>
      %200 = vector.broadcast %199 : f32 to vector<1x16x16xf32>
      %201 = arith.mulf %200, %197 : vector<1x16x16xf32>
      %202 = arith.addf %196, %201 : vector<1x16x16xf32>
      %c67 = arith.constant 67 : index
      %203 = memref.load %arg3[%c67] : memref<98xf32, #tpu.memory_space<smem>>
      %204 = vector.broadcast %203 : f32 to vector<1x16x16xf32>
      %205 = arith.mulf %204, %198 : vector<1x16x16xf32>
      %206 = arith.addf %202, %205 : vector<1x16x16xf32>
      %c0_132 = arith.constant 0 : index
      %c2_133 = arith.constant 2 : index
      %c5_134 = arith.constant 5 : index
      %207 = vector.load %arg5[%c0_132, %c2_133, %c5_134] : memref<1x22x22xf32, #tpu.memory_space<vmem>>, vector<1x16x16xf32>
      %c0_135 = arith.constant 0 : index
      %c2_136 = arith.constant 2 : index
      %c5_137 = arith.constant 5 : index
      %208 = vector.load %arg6[%c0_135, %c2_136, %c5_137] : memref<1x22x22xf32, #tpu.memory_space<vmem>>, vector<1x16x16xf32>
      %c19 = arith.constant 19 : index
      %209 = memref.load %arg3[%c19] : memref<98xf32, #tpu.memory_space<smem>>
      %210 = vector.broadcast %209 : f32 to vector<1x16x16xf32>
      %211 = arith.mulf %210, %207 : vector<1x16x16xf32>
      %212 = arith.addf %206, %211 : vector<1x16x16xf32>
      %c68 = arith.constant 68 : index
      %213 = memref.load %arg3[%c68] : memref<98xf32, #tpu.memory_space<smem>>
      %214 = vector.broadcast %213 : f32 to vector<1x16x16xf32>
      %215 = arith.mulf %214, %208 : vector<1x16x16xf32>
      %216 = arith.addf %212, %215 : vector<1x16x16xf32>
      %c0_138 = arith.constant 0 : index
      %c2_139 = arith.constant 2 : index
      %c6_140 = arith.constant 6 : index
      %217 = vector.load %arg5[%c0_138, %c2_139, %c6_140] : memref<1x22x22xf32, #tpu.memory_space<vmem>>, vector<1x16x16xf32>
      %c0_141 = arith.constant 0 : index
      %c2_142 = arith.constant 2 : index
      %c6_143 = arith.constant 6 : index
      %218 = vector.load %arg6[%c0_141, %c2_142, %c6_143] : memref<1x22x22xf32, #tpu.memory_space<vmem>>, vector<1x16x16xf32>
      %c20 = arith.constant 20 : index
      %219 = memref.load %arg3[%c20] : memref<98xf32, #tpu.memory_space<smem>>
      %220 = vector.broadcast %219 : f32 to vector<1x16x16xf32>
      %221 = arith.mulf %220, %217 : vector<1x16x16xf32>
      %222 = arith.addf %216, %221 : vector<1x16x16xf32>
      %c69 = arith.constant 69 : index
      %223 = memref.load %arg3[%c69] : memref<98xf32, #tpu.memory_space<smem>>
      %224 = vector.broadcast %223 : f32 to vector<1x16x16xf32>
      %225 = arith.mulf %224, %218 : vector<1x16x16xf32>
      %226 = arith.addf %222, %225 : vector<1x16x16xf32>
      %c0_144 = arith.constant 0 : index
      %c3_145 = arith.constant 3 : index
      %c0_146 = arith.constant 0 : index
      %227 = vector.load %arg5[%c0_144, %c3_145, %c0_146] : memref<1x22x22xf32, #tpu.memory_space<vmem>>, vector<1x16x16xf32>
      %c0_147 = arith.constant 0 : index
      %c3_148 = arith.constant 3 : index
      %c0_149 = arith.constant 0 : index
      %228 = vector.load %arg6[%c0_147, %c3_148, %c0_149] : memref<1x22x22xf32, #tpu.memory_space<vmem>>, vector<1x16x16xf32>
      %c21 = arith.constant 21 : index
      %229 = memref.load %arg3[%c21] : memref<98xf32, #tpu.memory_space<smem>>
      %230 = vector.broadcast %229 : f32 to vector<1x16x16xf32>
      %231 = arith.mulf %230, %227 : vector<1x16x16xf32>
      %232 = arith.addf %226, %231 : vector<1x16x16xf32>
      %c70 = arith.constant 70 : index
      %233 = memref.load %arg3[%c70] : memref<98xf32, #tpu.memory_space<smem>>
      %234 = vector.broadcast %233 : f32 to vector<1x16x16xf32>
      %235 = arith.mulf %234, %228 : vector<1x16x16xf32>
      %236 = arith.addf %232, %235 : vector<1x16x16xf32>
      %c0_150 = arith.constant 0 : index
      %c3_151 = arith.constant 3 : index
      %c1_152 = arith.constant 1 : index
      %237 = vector.load %arg5[%c0_150, %c3_151, %c1_152] : memref<1x22x22xf32, #tpu.memory_space<vmem>>, vector<1x16x16xf32>
      %c0_153 = arith.constant 0 : index
      %c3_154 = arith.constant 3 : index
      %c1_155 = arith.constant 1 : index
      %238 = vector.load %arg6[%c0_153, %c3_154, %c1_155] : memref<1x22x22xf32, #tpu.memory_space<vmem>>, vector<1x16x16xf32>
      %c22 = arith.constant 22 : index
      %239 = memref.load %arg3[%c22] : memref<98xf32, #tpu.memory_space<smem>>
      %240 = vector.broadcast %239 : f32 to vector<1x16x16xf32>
      %241 = arith.mulf %240, %237 : vector<1x16x16xf32>
      %242 = arith.addf %236, %241 : vector<1x16x16xf32>
      %c71 = arith.constant 71 : index
      %243 = memref.load %arg3[%c71] : memref<98xf32, #tpu.memory_space<smem>>
      %244 = vector.broadcast %243 : f32 to vector<1x16x16xf32>
      %245 = arith.mulf %244, %238 : vector<1x16x16xf32>
      %246 = arith.addf %242, %245 : vector<1x16x16xf32>
      %c0_156 = arith.constant 0 : index
      %c3_157 = arith.constant 3 : index
      %c2_158 = arith.constant 2 : index
      %247 = vector.load %arg5[%c0_156, %c3_157, %c2_158] : memref<1x22x22xf32, #tpu.memory_space<vmem>>, vector<1x16x16xf32>
      %c0_159 = arith.constant 0 : index
      %c3_160 = arith.constant 3 : index
      %c2_161 = arith.constant 2 : index
      %248 = vector.load %arg6[%c0_159, %c3_160, %c2_161] : memref<1x22x22xf32, #tpu.memory_space<vmem>>, vector<1x16x16xf32>
      %c23 = arith.constant 23 : index
      %249 = memref.load %arg3[%c23] : memref<98xf32, #tpu.memory_space<smem>>
      %250 = vector.broadcast %249 : f32 to vector<1x16x16xf32>
      %251 = arith.mulf %250, %247 : vector<1x16x16xf32>
      %252 = arith.addf %246, %251 : vector<1x16x16xf32>
      %c72 = arith.constant 72 : index
      %253 = memref.load %arg3[%c72] : memref<98xf32, #tpu.memory_space<smem>>
      %254 = vector.broadcast %253 : f32 to vector<1x16x16xf32>
      %255 = arith.mulf %254, %248 : vector<1x16x16xf32>
      %256 = arith.addf %252, %255 : vector<1x16x16xf32>
      %c0_162 = arith.constant 0 : index
      %c3_163 = arith.constant 3 : index
      %c3_164 = arith.constant 3 : index
      %257 = vector.load %arg5[%c0_162, %c3_163, %c3_164] : memref<1x22x22xf32, #tpu.memory_space<vmem>>, vector<1x16x16xf32>
      %c0_165 = arith.constant 0 : index
      %c3_166 = arith.constant 3 : index
      %c3_167 = arith.constant 3 : index
      %258 = vector.load %arg6[%c0_165, %c3_166, %c3_167] : memref<1x22x22xf32, #tpu.memory_space<vmem>>, vector<1x16x16xf32>
      %c24 = arith.constant 24 : index
      %259 = memref.load %arg3[%c24] : memref<98xf32, #tpu.memory_space<smem>>
      %260 = vector.broadcast %259 : f32 to vector<1x16x16xf32>
      %261 = arith.mulf %260, %257 : vector<1x16x16xf32>
      %262 = arith.addf %256, %261 : vector<1x16x16xf32>
      %c73 = arith.constant 73 : index
      %263 = memref.load %arg3[%c73] : memref<98xf32, #tpu.memory_space<smem>>
      %264 = vector.broadcast %263 : f32 to vector<1x16x16xf32>
      %265 = arith.mulf %264, %258 : vector<1x16x16xf32>
      %266 = arith.addf %262, %265 : vector<1x16x16xf32>
      %c0_168 = arith.constant 0 : index
      %c3_169 = arith.constant 3 : index
      %c4_170 = arith.constant 4 : index
      %267 = vector.load %arg5[%c0_168, %c3_169, %c4_170] : memref<1x22x22xf32, #tpu.memory_space<vmem>>, vector<1x16x16xf32>
      %c0_171 = arith.constant 0 : index
      %c3_172 = arith.constant 3 : index
      %c4_173 = arith.constant 4 : index
      %268 = vector.load %arg6[%c0_171, %c3_172, %c4_173] : memref<1x22x22xf32, #tpu.memory_space<vmem>>, vector<1x16x16xf32>
      %c25 = arith.constant 25 : index
      %269 = memref.load %arg3[%c25] : memref<98xf32, #tpu.memory_space<smem>>
      %270 = vector.broadcast %269 : f32 to vector<1x16x16xf32>
      %271 = arith.mulf %270, %267 : vector<1x16x16xf32>
      %272 = arith.addf %266, %271 : vector<1x16x16xf32>
      %c74 = arith.constant 74 : index
      %273 = memref.load %arg3[%c74] : memref<98xf32, #tpu.memory_space<smem>>
      %274 = vector.broadcast %273 : f32 to vector<1x16x16xf32>
      %275 = arith.mulf %274, %268 : vector<1x16x16xf32>
      %276 = arith.addf %272, %275 : vector<1x16x16xf32>
      %c0_174 = arith.constant 0 : index
      %c3_175 = arith.constant 3 : index
      %c5_176 = arith.constant 5 : index
      %277 = vector.load %arg5[%c0_174, %c3_175, %c5_176] : memref<1x22x22xf32, #tpu.memory_space<vmem>>, vector<1x16x16xf32>
      %c0_177 = arith.constant 0 : index
      %c3_178 = arith.constant 3 : index
      %c5_179 = arith.constant 5 : index
      %278 = vector.load %arg6[%c0_177, %c3_178, %c5_179] : memref<1x22x22xf32, #tpu.memory_space<vmem>>, vector<1x16x16xf32>
      %c26 = arith.constant 26 : index
      %279 = memref.load %arg3[%c26] : memref<98xf32, #tpu.memory_space<smem>>
      %280 = vector.broadcast %279 : f32 to vector<1x16x16xf32>
      %281 = arith.mulf %280, %277 : vector<1x16x16xf32>
      %282 = arith.addf %276, %281 : vector<1x16x16xf32>
      %c75 = arith.constant 75 : index
      %283 = memref.load %arg3[%c75] : memref<98xf32, #tpu.memory_space<smem>>
      %284 = vector.broadcast %283 : f32 to vector<1x16x16xf32>
      %285 = arith.mulf %284, %278 : vector<1x16x16xf32>
      %286 = arith.addf %282, %285 : vector<1x16x16xf32>
      %c0_180 = arith.constant 0 : index
      %c3_181 = arith.constant 3 : index
      %c6_182 = arith.constant 6 : index
      %287 = vector.load %arg5[%c0_180, %c3_181, %c6_182] : memref<1x22x22xf32, #tpu.memory_space<vmem>>, vector<1x16x16xf32>
      %c0_183 = arith.constant 0 : index
      %c3_184 = arith.constant 3 : index
      %c6_185 = arith.constant 6 : index
      %288 = vector.load %arg6[%c0_183, %c3_184, %c6_185] : memref<1x22x22xf32, #tpu.memory_space<vmem>>, vector<1x16x16xf32>
      %c27 = arith.constant 27 : index
      %289 = memref.load %arg3[%c27] : memref<98xf32, #tpu.memory_space<smem>>
      %290 = vector.broadcast %289 : f32 to vector<1x16x16xf32>
      %291 = arith.mulf %290, %287 : vector<1x16x16xf32>
      %292 = arith.addf %286, %291 : vector<1x16x16xf32>
      %c76 = arith.constant 76 : index
      %293 = memref.load %arg3[%c76] : memref<98xf32, #tpu.memory_space<smem>>
      %294 = vector.broadcast %293 : f32 to vector<1x16x16xf32>
      %295 = arith.mulf %294, %288 : vector<1x16x16xf32>
      %296 = arith.addf %292, %295 : vector<1x16x16xf32>
      %c0_186 = arith.constant 0 : index
      %c4_187 = arith.constant 4 : index
      %c0_188 = arith.constant 0 : index
      %297 = vector.load %arg5[%c0_186, %c4_187, %c0_188] : memref<1x22x22xf32, #tpu.memory_space<vmem>>, vector<1x16x16xf32>
      %c0_189 = arith.constant 0 : index
      %c4_190 = arith.constant 4 : index
      %c0_191 = arith.constant 0 : index
      %298 = vector.load %arg6[%c0_189, %c4_190, %c0_191] : memref<1x22x22xf32, #tpu.memory_space<vmem>>, vector<1x16x16xf32>
      %c28 = arith.constant 28 : index
      %299 = memref.load %arg3[%c28] : memref<98xf32, #tpu.memory_space<smem>>
      %300 = vector.broadcast %299 : f32 to vector<1x16x16xf32>
      %301 = arith.mulf %300, %297 : vector<1x16x16xf32>
      %302 = arith.addf %296, %301 : vector<1x16x16xf32>
      %c77 = arith.constant 77 : index
      %303 = memref.load %arg3[%c77] : memref<98xf32, #tpu.memory_space<smem>>
      %304 = vector.broadcast %303 : f32 to vector<1x16x16xf32>
      %305 = arith.mulf %304, %298 : vector<1x16x16xf32>
      %306 = arith.addf %302, %305 : vector<1x16x16xf32>
      %c0_192 = arith.constant 0 : index
      %c4_193 = arith.constant 4 : index
      %c1_194 = arith.constant 1 : index
      %307 = vector.load %arg5[%c0_192, %c4_193, %c1_194] : memref<1x22x22xf32, #tpu.memory_space<vmem>>, vector<1x16x16xf32>
      %c0_195 = arith.constant 0 : index
      %c4_196 = arith.constant 4 : index
      %c1_197 = arith.constant 1 : index
      %308 = vector.load %arg6[%c0_195, %c4_196, %c1_197] : memref<1x22x22xf32, #tpu.memory_space<vmem>>, vector<1x16x16xf32>
      %c29 = arith.constant 29 : index
      %309 = memref.load %arg3[%c29] : memref<98xf32, #tpu.memory_space<smem>>
      %310 = vector.broadcast %309 : f32 to vector<1x16x16xf32>
      %311 = arith.mulf %310, %307 : vector<1x16x16xf32>
      %312 = arith.addf %306, %311 : vector<1x16x16xf32>
      %c78 = arith.constant 78 : index
      %313 = memref.load %arg3[%c78] : memref<98xf32, #tpu.memory_space<smem>>
      %314 = vector.broadcast %313 : f32 to vector<1x16x16xf32>
      %315 = arith.mulf %314, %308 : vector<1x16x16xf32>
      %316 = arith.addf %312, %315 : vector<1x16x16xf32>
      %c0_198 = arith.constant 0 : index
      %c4_199 = arith.constant 4 : index
      %c2_200 = arith.constant 2 : index
      %317 = vector.load %arg5[%c0_198, %c4_199, %c2_200] : memref<1x22x22xf32, #tpu.memory_space<vmem>>, vector<1x16x16xf32>
      %c0_201 = arith.constant 0 : index
      %c4_202 = arith.constant 4 : index
      %c2_203 = arith.constant 2 : index
      %318 = vector.load %arg6[%c0_201, %c4_202, %c2_203] : memref<1x22x22xf32, #tpu.memory_space<vmem>>, vector<1x16x16xf32>
      %c30 = arith.constant 30 : index
      %319 = memref.load %arg3[%c30] : memref<98xf32, #tpu.memory_space<smem>>
      %320 = vector.broadcast %319 : f32 to vector<1x16x16xf32>
      %321 = arith.mulf %320, %317 : vector<1x16x16xf32>
      %322 = arith.addf %316, %321 : vector<1x16x16xf32>
      %c79 = arith.constant 79 : index
      %323 = memref.load %arg3[%c79] : memref<98xf32, #tpu.memory_space<smem>>
      %324 = vector.broadcast %323 : f32 to vector<1x16x16xf32>
      %325 = arith.mulf %324, %318 : vector<1x16x16xf32>
      %326 = arith.addf %322, %325 : vector<1x16x16xf32>
      %c0_204 = arith.constant 0 : index
      %c4_205 = arith.constant 4 : index
      %c3_206 = arith.constant 3 : index
      %327 = vector.load %arg5[%c0_204, %c4_205, %c3_206] : memref<1x22x22xf32, #tpu.memory_space<vmem>>, vector<1x16x16xf32>
      %c0_207 = arith.constant 0 : index
      %c4_208 = arith.constant 4 : index
      %c3_209 = arith.constant 3 : index
      %328 = vector.load %arg6[%c0_207, %c4_208, %c3_209] : memref<1x22x22xf32, #tpu.memory_space<vmem>>, vector<1x16x16xf32>
      %c31 = arith.constant 31 : index
      %329 = memref.load %arg3[%c31] : memref<98xf32, #tpu.memory_space<smem>>
      %330 = vector.broadcast %329 : f32 to vector<1x16x16xf32>
      %331 = arith.mulf %330, %327 : vector<1x16x16xf32>
      %332 = arith.addf %326, %331 : vector<1x16x16xf32>
      %c80 = arith.constant 80 : index
      %333 = memref.load %arg3[%c80] : memref<98xf32, #tpu.memory_space<smem>>
      %334 = vector.broadcast %333 : f32 to vector<1x16x16xf32>
      %335 = arith.mulf %334, %328 : vector<1x16x16xf32>
      %336 = arith.addf %332, %335 : vector<1x16x16xf32>
      %c0_210 = arith.constant 0 : index
      %c4_211 = arith.constant 4 : index
      %c4_212 = arith.constant 4 : index
      %337 = vector.load %arg5[%c0_210, %c4_211, %c4_212] : memref<1x22x22xf32, #tpu.memory_space<vmem>>, vector<1x16x16xf32>
      %c0_213 = arith.constant 0 : index
      %c4_214 = arith.constant 4 : index
      %c4_215 = arith.constant 4 : index
      %338 = vector.load %arg6[%c0_213, %c4_214, %c4_215] : memref<1x22x22xf32, #tpu.memory_space<vmem>>, vector<1x16x16xf32>
      %c32 = arith.constant 32 : index
      %339 = memref.load %arg3[%c32] : memref<98xf32, #tpu.memory_space<smem>>
      %340 = vector.broadcast %339 : f32 to vector<1x16x16xf32>
      %341 = arith.mulf %340, %337 : vector<1x16x16xf32>
      %342 = arith.addf %336, %341 : vector<1x16x16xf32>
      %c81 = arith.constant 81 : index
      %343 = memref.load %arg3[%c81] : memref<98xf32, #tpu.memory_space<smem>>
      %344 = vector.broadcast %343 : f32 to vector<1x16x16xf32>
      %345 = arith.mulf %344, %338 : vector<1x16x16xf32>
      %346 = arith.addf %342, %345 : vector<1x16x16xf32>
      %c0_216 = arith.constant 0 : index
      %c4_217 = arith.constant 4 : index
      %c5_218 = arith.constant 5 : index
      %347 = vector.load %arg5[%c0_216, %c4_217, %c5_218] : memref<1x22x22xf32, #tpu.memory_space<vmem>>, vector<1x16x16xf32>
      %c0_219 = arith.constant 0 : index
      %c4_220 = arith.constant 4 : index
      %c5_221 = arith.constant 5 : index
      %348 = vector.load %arg6[%c0_219, %c4_220, %c5_221] : memref<1x22x22xf32, #tpu.memory_space<vmem>>, vector<1x16x16xf32>
      %c33 = arith.constant 33 : index
      %349 = memref.load %arg3[%c33] : memref<98xf32, #tpu.memory_space<smem>>
      %350 = vector.broadcast %349 : f32 to vector<1x16x16xf32>
      %351 = arith.mulf %350, %347 : vector<1x16x16xf32>
      %352 = arith.addf %346, %351 : vector<1x16x16xf32>
      %c82 = arith.constant 82 : index
      %353 = memref.load %arg3[%c82] : memref<98xf32, #tpu.memory_space<smem>>
      %354 = vector.broadcast %353 : f32 to vector<1x16x16xf32>
      %355 = arith.mulf %354, %348 : vector<1x16x16xf32>
      %356 = arith.addf %352, %355 : vector<1x16x16xf32>
      %c0_222 = arith.constant 0 : index
      %c4_223 = arith.constant 4 : index
      %c6_224 = arith.constant 6 : index
      %357 = vector.load %arg5[%c0_222, %c4_223, %c6_224] : memref<1x22x22xf32, #tpu.memory_space<vmem>>, vector<1x16x16xf32>
      %c0_225 = arith.constant 0 : index
      %c4_226 = arith.constant 4 : index
      %c6_227 = arith.constant 6 : index
      %358 = vector.load %arg6[%c0_225, %c4_226, %c6_227] : memref<1x22x22xf32, #tpu.memory_space<vmem>>, vector<1x16x16xf32>
      %c34 = arith.constant 34 : index
      %359 = memref.load %arg3[%c34] : memref<98xf32, #tpu.memory_space<smem>>
      %360 = vector.broadcast %359 : f32 to vector<1x16x16xf32>
      %361 = arith.mulf %360, %357 : vector<1x16x16xf32>
      %362 = arith.addf %356, %361 : vector<1x16x16xf32>
      %c83 = arith.constant 83 : index
      %363 = memref.load %arg3[%c83] : memref<98xf32, #tpu.memory_space<smem>>
      %364 = vector.broadcast %363 : f32 to vector<1x16x16xf32>
      %365 = arith.mulf %364, %358 : vector<1x16x16xf32>
      %366 = arith.addf %362, %365 : vector<1x16x16xf32>
      %c0_228 = arith.constant 0 : index
      %c5_229 = arith.constant 5 : index
      %c0_230 = arith.constant 0 : index
      %367 = vector.load %arg5[%c0_228, %c5_229, %c0_230] : memref<1x22x22xf32, #tpu.memory_space<vmem>>, vector<1x16x16xf32>
      %c0_231 = arith.constant 0 : index
      %c5_232 = arith.constant 5 : index
      %c0_233 = arith.constant 0 : index
      %368 = vector.load %arg6[%c0_231, %c5_232, %c0_233] : memref<1x22x22xf32, #tpu.memory_space<vmem>>, vector<1x16x16xf32>
      %c35 = arith.constant 35 : index
      %369 = memref.load %arg3[%c35] : memref<98xf32, #tpu.memory_space<smem>>
      %370 = vector.broadcast %369 : f32 to vector<1x16x16xf32>
      %371 = arith.mulf %370, %367 : vector<1x16x16xf32>
      %372 = arith.addf %366, %371 : vector<1x16x16xf32>
      %c84 = arith.constant 84 : index
      %373 = memref.load %arg3[%c84] : memref<98xf32, #tpu.memory_space<smem>>
      %374 = vector.broadcast %373 : f32 to vector<1x16x16xf32>
      %375 = arith.mulf %374, %368 : vector<1x16x16xf32>
      %376 = arith.addf %372, %375 : vector<1x16x16xf32>
      %c0_234 = arith.constant 0 : index
      %c5_235 = arith.constant 5 : index
      %c1_236 = arith.constant 1 : index
      %377 = vector.load %arg5[%c0_234, %c5_235, %c1_236] : memref<1x22x22xf32, #tpu.memory_space<vmem>>, vector<1x16x16xf32>
      %c0_237 = arith.constant 0 : index
      %c5_238 = arith.constant 5 : index
      %c1_239 = arith.constant 1 : index
      %378 = vector.load %arg6[%c0_237, %c5_238, %c1_239] : memref<1x22x22xf32, #tpu.memory_space<vmem>>, vector<1x16x16xf32>
      %c36 = arith.constant 36 : index
      %379 = memref.load %arg3[%c36] : memref<98xf32, #tpu.memory_space<smem>>
      %380 = vector.broadcast %379 : f32 to vector<1x16x16xf32>
      %381 = arith.mulf %380, %377 : vector<1x16x16xf32>
      %382 = arith.addf %376, %381 : vector<1x16x16xf32>
      %c85 = arith.constant 85 : index
      %383 = memref.load %arg3[%c85] : memref<98xf32, #tpu.memory_space<smem>>
      %384 = vector.broadcast %383 : f32 to vector<1x16x16xf32>
      %385 = arith.mulf %384, %378 : vector<1x16x16xf32>
      %386 = arith.addf %382, %385 : vector<1x16x16xf32>
      %c0_240 = arith.constant 0 : index
      %c5_241 = arith.constant 5 : index
      %c2_242 = arith.constant 2 : index
      %387 = vector.load %arg5[%c0_240, %c5_241, %c2_242] : memref<1x22x22xf32, #tpu.memory_space<vmem>>, vector<1x16x16xf32>
      %c0_243 = arith.constant 0 : index
      %c5_244 = arith.constant 5 : index
      %c2_245 = arith.constant 2 : index
      %388 = vector.load %arg6[%c0_243, %c5_244, %c2_245] : memref<1x22x22xf32, #tpu.memory_space<vmem>>, vector<1x16x16xf32>
      %c37 = arith.constant 37 : index
      %389 = memref.load %arg3[%c37] : memref<98xf32, #tpu.memory_space<smem>>
      %390 = vector.broadcast %389 : f32 to vector<1x16x16xf32>
      %391 = arith.mulf %390, %387 : vector<1x16x16xf32>
      %392 = arith.addf %386, %391 : vector<1x16x16xf32>
      %c86 = arith.constant 86 : index
      %393 = memref.load %arg3[%c86] : memref<98xf32, #tpu.memory_space<smem>>
      %394 = vector.broadcast %393 : f32 to vector<1x16x16xf32>
      %395 = arith.mulf %394, %388 : vector<1x16x16xf32>
      %396 = arith.addf %392, %395 : vector<1x16x16xf32>
      %c0_246 = arith.constant 0 : index
      %c5_247 = arith.constant 5 : index
      %c3_248 = arith.constant 3 : index
      %397 = vector.load %arg5[%c0_246, %c5_247, %c3_248] : memref<1x22x22xf32, #tpu.memory_space<vmem>>, vector<1x16x16xf32>
      %c0_249 = arith.constant 0 : index
      %c5_250 = arith.constant 5 : index
      %c3_251 = arith.constant 3 : index
      %398 = vector.load %arg6[%c0_249, %c5_250, %c3_251] : memref<1x22x22xf32, #tpu.memory_space<vmem>>, vector<1x16x16xf32>
      %c38 = arith.constant 38 : index
      %399 = memref.load %arg3[%c38] : memref<98xf32, #tpu.memory_space<smem>>
      %400 = vector.broadcast %399 : f32 to vector<1x16x16xf32>
      %401 = arith.mulf %400, %397 : vector<1x16x16xf32>
      %402 = arith.addf %396, %401 : vector<1x16x16xf32>
      %c87 = arith.constant 87 : index
      %403 = memref.load %arg3[%c87] : memref<98xf32, #tpu.memory_space<smem>>
      %404 = vector.broadcast %403 : f32 to vector<1x16x16xf32>
      %405 = arith.mulf %404, %398 : vector<1x16x16xf32>
      %406 = arith.addf %402, %405 : vector<1x16x16xf32>
      %c0_252 = arith.constant 0 : index
      %c5_253 = arith.constant 5 : index
      %c4_254 = arith.constant 4 : index
      %407 = vector.load %arg5[%c0_252, %c5_253, %c4_254] : memref<1x22x22xf32, #tpu.memory_space<vmem>>, vector<1x16x16xf32>
      %c0_255 = arith.constant 0 : index
      %c5_256 = arith.constant 5 : index
      %c4_257 = arith.constant 4 : index
      %408 = vector.load %arg6[%c0_255, %c5_256, %c4_257] : memref<1x22x22xf32, #tpu.memory_space<vmem>>, vector<1x16x16xf32>
      %c39 = arith.constant 39 : index
      %409 = memref.load %arg3[%c39] : memref<98xf32, #tpu.memory_space<smem>>
      %410 = vector.broadcast %409 : f32 to vector<1x16x16xf32>
      %411 = arith.mulf %410, %407 : vector<1x16x16xf32>
      %412 = arith.addf %406, %411 : vector<1x16x16xf32>
      %c88 = arith.constant 88 : index
      %413 = memref.load %arg3[%c88] : memref<98xf32, #tpu.memory_space<smem>>
      %414 = vector.broadcast %413 : f32 to vector<1x16x16xf32>
      %415 = arith.mulf %414, %408 : vector<1x16x16xf32>
      %416 = arith.addf %412, %415 : vector<1x16x16xf32>
      %c0_258 = arith.constant 0 : index
      %c5_259 = arith.constant 5 : index
      %c5_260 = arith.constant 5 : index
      %417 = vector.load %arg5[%c0_258, %c5_259, %c5_260] : memref<1x22x22xf32, #tpu.memory_space<vmem>>, vector<1x16x16xf32>
      %c0_261 = arith.constant 0 : index
      %c5_262 = arith.constant 5 : index
      %c5_263 = arith.constant 5 : index
      %418 = vector.load %arg6[%c0_261, %c5_262, %c5_263] : memref<1x22x22xf32, #tpu.memory_space<vmem>>, vector<1x16x16xf32>
      %c40 = arith.constant 40 : index
      %419 = memref.load %arg3[%c40] : memref<98xf32, #tpu.memory_space<smem>>
      %420 = vector.broadcast %419 : f32 to vector<1x16x16xf32>
      %421 = arith.mulf %420, %417 : vector<1x16x16xf32>
      %422 = arith.addf %416, %421 : vector<1x16x16xf32>
      %c89 = arith.constant 89 : index
      %423 = memref.load %arg3[%c89] : memref<98xf32, #tpu.memory_space<smem>>
      %424 = vector.broadcast %423 : f32 to vector<1x16x16xf32>
      %425 = arith.mulf %424, %418 : vector<1x16x16xf32>
      %426 = arith.addf %422, %425 : vector<1x16x16xf32>
      %c0_264 = arith.constant 0 : index
      %c5_265 = arith.constant 5 : index
      %c6_266 = arith.constant 6 : index
      %427 = vector.load %arg5[%c0_264, %c5_265, %c6_266] : memref<1x22x22xf32, #tpu.memory_space<vmem>>, vector<1x16x16xf32>
      %c0_267 = arith.constant 0 : index
      %c5_268 = arith.constant 5 : index
      %c6_269 = arith.constant 6 : index
      %428 = vector.load %arg6[%c0_267, %c5_268, %c6_269] : memref<1x22x22xf32, #tpu.memory_space<vmem>>, vector<1x16x16xf32>
      %c41 = arith.constant 41 : index
      %429 = memref.load %arg3[%c41] : memref<98xf32, #tpu.memory_space<smem>>
      %430 = vector.broadcast %429 : f32 to vector<1x16x16xf32>
      %431 = arith.mulf %430, %427 : vector<1x16x16xf32>
      %432 = arith.addf %426, %431 : vector<1x16x16xf32>
      %c90 = arith.constant 90 : index
      %433 = memref.load %arg3[%c90] : memref<98xf32, #tpu.memory_space<smem>>
      %434 = vector.broadcast %433 : f32 to vector<1x16x16xf32>
      %435 = arith.mulf %434, %428 : vector<1x16x16xf32>
      %436 = arith.addf %432, %435 : vector<1x16x16xf32>
      %c0_270 = arith.constant 0 : index
      %c6_271 = arith.constant 6 : index
      %c0_272 = arith.constant 0 : index
      %437 = vector.load %arg5[%c0_270, %c6_271, %c0_272] : memref<1x22x22xf32, #tpu.memory_space<vmem>>, vector<1x16x16xf32>
      %c0_273 = arith.constant 0 : index
      %c6_274 = arith.constant 6 : index
      %c0_275 = arith.constant 0 : index
      %438 = vector.load %arg6[%c0_273, %c6_274, %c0_275] : memref<1x22x22xf32, #tpu.memory_space<vmem>>, vector<1x16x16xf32>
      %c42 = arith.constant 42 : index
      %439 = memref.load %arg3[%c42] : memref<98xf32, #tpu.memory_space<smem>>
      %440 = vector.broadcast %439 : f32 to vector<1x16x16xf32>
      %441 = arith.mulf %440, %437 : vector<1x16x16xf32>
      %442 = arith.addf %436, %441 : vector<1x16x16xf32>
      %c91 = arith.constant 91 : index
      %443 = memref.load %arg3[%c91] : memref<98xf32, #tpu.memory_space<smem>>
      %444 = vector.broadcast %443 : f32 to vector<1x16x16xf32>
      %445 = arith.mulf %444, %438 : vector<1x16x16xf32>
      %446 = arith.addf %442, %445 : vector<1x16x16xf32>
      %c0_276 = arith.constant 0 : index
      %c6_277 = arith.constant 6 : index
      %c1_278 = arith.constant 1 : index
      %447 = vector.load %arg5[%c0_276, %c6_277, %c1_278] : memref<1x22x22xf32, #tpu.memory_space<vmem>>, vector<1x16x16xf32>
      %c0_279 = arith.constant 0 : index
      %c6_280 = arith.constant 6 : index
      %c1_281 = arith.constant 1 : index
      %448 = vector.load %arg6[%c0_279, %c6_280, %c1_281] : memref<1x22x22xf32, #tpu.memory_space<vmem>>, vector<1x16x16xf32>
      %c43 = arith.constant 43 : index
      %449 = memref.load %arg3[%c43] : memref<98xf32, #tpu.memory_space<smem>>
      %450 = vector.broadcast %449 : f32 to vector<1x16x16xf32>
      %451 = arith.mulf %450, %447 : vector<1x16x16xf32>
      %452 = arith.addf %446, %451 : vector<1x16x16xf32>
      %c92 = arith.constant 92 : index
      %453 = memref.load %arg3[%c92] : memref<98xf32, #tpu.memory_space<smem>>
      %454 = vector.broadcast %453 : f32 to vector<1x16x16xf32>
      %455 = arith.mulf %454, %448 : vector<1x16x16xf32>
      %456 = arith.addf %452, %455 : vector<1x16x16xf32>
      %c0_282 = arith.constant 0 : index
      %c6_283 = arith.constant 6 : index
      %c2_284 = arith.constant 2 : index
      %457 = vector.load %arg5[%c0_282, %c6_283, %c2_284] : memref<1x22x22xf32, #tpu.memory_space<vmem>>, vector<1x16x16xf32>
      %c0_285 = arith.constant 0 : index
      %c6_286 = arith.constant 6 : index
      %c2_287 = arith.constant 2 : index
      %458 = vector.load %arg6[%c0_285, %c6_286, %c2_287] : memref<1x22x22xf32, #tpu.memory_space<vmem>>, vector<1x16x16xf32>
      %c44 = arith.constant 44 : index
      %459 = memref.load %arg3[%c44] : memref<98xf32, #tpu.memory_space<smem>>
      %460 = vector.broadcast %459 : f32 to vector<1x16x16xf32>
      %461 = arith.mulf %460, %457 : vector<1x16x16xf32>
      %462 = arith.addf %456, %461 : vector<1x16x16xf32>
      %c93 = arith.constant 93 : index
      %463 = memref.load %arg3[%c93] : memref<98xf32, #tpu.memory_space<smem>>
      %464 = vector.broadcast %463 : f32 to vector<1x16x16xf32>
      %465 = arith.mulf %464, %458 : vector<1x16x16xf32>
      %466 = arith.addf %462, %465 : vector<1x16x16xf32>
      %c0_288 = arith.constant 0 : index
      %c6_289 = arith.constant 6 : index
      %c3_290 = arith.constant 3 : index
      %467 = vector.load %arg5[%c0_288, %c6_289, %c3_290] : memref<1x22x22xf32, #tpu.memory_space<vmem>>, vector<1x16x16xf32>
      %c0_291 = arith.constant 0 : index
      %c6_292 = arith.constant 6 : index
      %c3_293 = arith.constant 3 : index
      %468 = vector.load %arg6[%c0_291, %c6_292, %c3_293] : memref<1x22x22xf32, #tpu.memory_space<vmem>>, vector<1x16x16xf32>
      %c45 = arith.constant 45 : index
      %469 = memref.load %arg3[%c45] : memref<98xf32, #tpu.memory_space<smem>>
      %470 = vector.broadcast %469 : f32 to vector<1x16x16xf32>
      %471 = arith.mulf %470, %467 : vector<1x16x16xf32>
      %472 = arith.addf %466, %471 : vector<1x16x16xf32>
      %c94 = arith.constant 94 : index
      %473 = memref.load %arg3[%c94] : memref<98xf32, #tpu.memory_space<smem>>
      %474 = vector.broadcast %473 : f32 to vector<1x16x16xf32>
      %475 = arith.mulf %474, %468 : vector<1x16x16xf32>
      %476 = arith.addf %472, %475 : vector<1x16x16xf32>
      %c0_294 = arith.constant 0 : index
      %c6_295 = arith.constant 6 : index
      %c4_296 = arith.constant 4 : index
      %477 = vector.load %arg5[%c0_294, %c6_295, %c4_296] : memref<1x22x22xf32, #tpu.memory_space<vmem>>, vector<1x16x16xf32>
      %c0_297 = arith.constant 0 : index
      %c6_298 = arith.constant 6 : index
      %c4_299 = arith.constant 4 : index
      %478 = vector.load %arg6[%c0_297, %c6_298, %c4_299] : memref<1x22x22xf32, #tpu.memory_space<vmem>>, vector<1x16x16xf32>
      %c46 = arith.constant 46 : index
      %479 = memref.load %arg3[%c46] : memref<98xf32, #tpu.memory_space<smem>>
      %480 = vector.broadcast %479 : f32 to vector<1x16x16xf32>
      %481 = arith.mulf %480, %477 : vector<1x16x16xf32>
      %482 = arith.addf %476, %481 : vector<1x16x16xf32>
      %c95 = arith.constant 95 : index
      %483 = memref.load %arg3[%c95] : memref<98xf32, #tpu.memory_space<smem>>
      %484 = vector.broadcast %483 : f32 to vector<1x16x16xf32>
      %485 = arith.mulf %484, %478 : vector<1x16x16xf32>
      %486 = arith.addf %482, %485 : vector<1x16x16xf32>
      %c0_300 = arith.constant 0 : index
      %c6_301 = arith.constant 6 : index
      %c5_302 = arith.constant 5 : index
      %487 = vector.load %arg5[%c0_300, %c6_301, %c5_302] : memref<1x22x22xf32, #tpu.memory_space<vmem>>, vector<1x16x16xf32>
      %c0_303 = arith.constant 0 : index
      %c6_304 = arith.constant 6 : index
      %c5_305 = arith.constant 5 : index
      %488 = vector.load %arg6[%c0_303, %c6_304, %c5_305] : memref<1x22x22xf32, #tpu.memory_space<vmem>>, vector<1x16x16xf32>
      %c47 = arith.constant 47 : index
      %489 = memref.load %arg3[%c47] : memref<98xf32, #tpu.memory_space<smem>>
      %490 = vector.broadcast %489 : f32 to vector<1x16x16xf32>
      %491 = arith.mulf %490, %487 : vector<1x16x16xf32>
      %492 = arith.addf %486, %491 : vector<1x16x16xf32>
      %c96 = arith.constant 96 : index
      %493 = memref.load %arg3[%c96] : memref<98xf32, #tpu.memory_space<smem>>
      %494 = vector.broadcast %493 : f32 to vector<1x16x16xf32>
      %495 = arith.mulf %494, %488 : vector<1x16x16xf32>
      %496 = arith.addf %492, %495 : vector<1x16x16xf32>
      %c0_306 = arith.constant 0 : index
      %c6_307 = arith.constant 6 : index
      %c6_308 = arith.constant 6 : index
      %497 = vector.load %arg5[%c0_306, %c6_307, %c6_308] : memref<1x22x22xf32, #tpu.memory_space<vmem>>, vector<1x16x16xf32>
      %c0_309 = arith.constant 0 : index
      %c6_310 = arith.constant 6 : index
      %c6_311 = arith.constant 6 : index
      %498 = vector.load %arg6[%c0_309, %c6_310, %c6_311] : memref<1x22x22xf32, #tpu.memory_space<vmem>>, vector<1x16x16xf32>
      %c48 = arith.constant 48 : index
      %499 = memref.load %arg3[%c48] : memref<98xf32, #tpu.memory_space<smem>>
      %500 = vector.broadcast %499 : f32 to vector<1x16x16xf32>
      %501 = arith.mulf %500, %497 : vector<1x16x16xf32>
      %502 = arith.addf %496, %501 : vector<1x16x16xf32>
      %c97 = arith.constant 97 : index
      %503 = memref.load %arg3[%c97] : memref<98xf32, #tpu.memory_space<smem>>
      %504 = vector.broadcast %503 : f32 to vector<1x16x16xf32>
      %505 = arith.mulf %504, %498 : vector<1x16x16xf32>
      %506 = arith.addf %502, %505 : vector<1x16x16xf32>
      %cst_312 = arith.constant 0.000000e+00 : f32
      %507 = vector.broadcast %cst_312 : f32 to vector<1x16x16xf32>
      %508 = arith.subf %507, %506 : vector<1x16x16xf32>
      %509 = math.exp %508 : vector<1x16x16xf32>
      %cst_313 = arith.constant 1.000000e+00 : f32
      %510 = vector.broadcast %cst_313 : f32 to vector<1x16x16xf32>
      %511 = arith.addf %510, %509 : vector<1x16x16xf32>
      %512 = tpu.reciprocal %511 : vector<1x16x16xf32> -> vector<1x16x16xf32>
      %c0_314 = arith.constant 0 : index
      %c0_315 = arith.constant 0 : index
      %c0_316 = arith.constant 0 : index
      %513 = vector.load %arg4[%c0_314, %c0_315, %c0_316] : memref<1x16x16xf32, #tpu.memory_space<vmem>>, vector<1x16x16xf32>
      tpu.vector_store %arg4[%c0_314, %c0_315, %c0_316], %512 {strides = array<i32>} : memref<1x16x16xf32, #tpu.memory_space<vmem>>, vector<1x16x16xf32>,
    } else {
    }
    return
  }
  func.func @transform_0(%arg0: i32, %arg1: i32) -> (i32, i32, i32, i32) {
    %c0_i32 = arith.constant 0 : i32
    %c0_i32_0 = arith.constant 0 : i32
    %c0_i32_1 = arith.constant 0 : i32
    return %arg0, %arg1, %c0_i32, %c0_i32_0 : i32, i32, i32, i32
  }
  func.func @transform_1(%arg0: i32, %arg1: i32) -> i32 {
    %c0_i32 = arith.constant 0 : i32
    %c0_i32_0 = arith.constant 0 : i32
    return %c0_i32 : i32
  }
  func.func @transform_2(%arg0: i32, %arg1: i32) -> (i32, i32, i32) {
    %c0_i32 = arith.constant 0 : i32
    %c0_i32_0 = arith.constant 0 : i32
    %c0_i32_1 = arith.constant 0 : i32
    return %arg0, %c0_i32, %c0_i32_0 : i32, i32, i32
  }
}

</mosaic_0001>

<llo_original>
// kernel: tpu_custom_call.1
$region0: #{tpu_custom_call.1}
  #allocation0 [shape = 'u32[]', space=smem, size = 0x4, offset = 0x4, fixed_abs, tag = 'smem constant byte address 0x4 - core index']
  #allocation1 [shape = 'u32[144,128]{1,0:T(1,128)}', space=vmem, size = 0x12000, scoped, tag = 'internal scratch']
  #allocation2 [shape = 'f32[1,22,22]{2,1,0:T(8,128)}', space=vmem, size = 0x3000, scoped, tag = 'scratch operand']
  #allocation3 [shape = 'f32[1,22,22]{2,1,0:T(8,128)}', space=vmem, size = 0x3000, scoped, tag = 'scratch operand']
  %s0 = inlined_call_operand.hbm [shape: f32[2,4,16,16], index: 0, kind: input, shape index: {}]
  %s1 = inlined_call_operand.vmem [shape: f32[98], index: 1, kind: input, shape index: {}]
  %s2 = inlined_call_operand.hbm [shape: f32[2,16,16], index: 2, kind: output, shape index: {}]
  %s3 = sld [smem:[#allocation0]]
  $region61: #{tpu_custom_call.1} parent=0
    _
  %s5 = ssub.s32 1, %s3
  %s6 = scalar_select 0, %s5, %s3
  $region1: #{tpu_custom_call.1} parent=0
    #allocation4 [shape = 'u8[65536]{0}', space=vmem, size = 0x10000, scoped, tag = 'input window, operand 0']
    #allocation5 [shape = 's32[2]{0}', space=sflag, size = 0x8, scoped, tag = 'scoped memory for tpu_custom_call.1']
    #allocation6 [shape = 's32[2]{0}', space=sflag, size = 0x8, scoped, tag = 'scoped memory for tpu_custom_call.1']
    #allocation7 [shape = 's32[2]{0}', space=sflag, size = 0x8, scoped, tag = 'scoped memory for tpu_custom_call.1']
    #allocation8 [shape = 'u8[512]{0}', space=smem, size = 0x200, scoped, tag = 'input window, operand 1, single buffered']
    #allocation9 [shape = 'u8[16384]{0}', space=vmem, size = 0x4000, scoped, tag = 'output window, operand 0']
    %7 = vsyncpa [#allocation5], 0
    %s8 = scalar_lea.sflag [#allocation5], 1
    %9 = vsyncpa %s8, 0
    %10 = vsyncpa [#allocation7], 0
    %11 = vsyncpa [#allocation6], 0
    %s12 = scalar_lea.sflag [#allocation6], 1
    %13 = vsyncpa %s12, 0
    loop: start=0, step=1, limit=4
    $region2: #{tpu_custom_call.1} parent=1 // loop_pre_header
      _
    $region3: #{tpu_custom_call.1} parent=1 // loop_header
      %s15 = sphi 0, %s19
      %p16 = scmp.ge.s32.totalorder %s15, 4
      %s22 = sphi 0, %s34
      %s23 = sphi 0, %s30
      %s24 = sphi 0, %s22
      %s25 = sphi 0, %s23
      %s26 = sphi 0, %s24
      %s27 = sphi 0, %s25
      %s39 = sphi 0, %s41
      %s42 = sphi 0, %s39
      %s43 = sphi 0, %s42
      %s59 = sphi 0, %s43
      %s63 = sphi 0, %s63
      %s65 = sphi 0, %s63
      %s66 = sphi 0, %s65
      %s80 = sphi 0, %s66
      %s86 = sphi 0, %s88
      %s89 = sphi 0, %s86
      %s90 = sphi 0, %s89
      %s106 = sphi 0, %s90
    $region4: #{tpu_custom_call.1} parent=1 // loop_header_branch
      %18 = sbr.rel (%p16) target = $region8
    $region5: #{tpu_custom_call.1} parent=1 // loop_body
      %s20 = ssub.s32 %s15, 1
      %s21 = ssub.s32 %s15, 2
      %s28 = sadd.s32 1, %s23
      %p29 = scmp.ge.s32.totalorder %s28, 1
      %s30 = scalar_select %p29, 0, %s28
      %s31 = sadd.s32 1, %s22
      %s32 = scalar_select %p29, %s31, %s22
      %p33 = scmp.ge.s32.totalorder %s32, 2
      %s34 = scalar_select %p33, 0, %s32
      %s35 = ssub.s32 %s22, %s34
      %s36 = ssub.s32 %s23, %s30
      %s37 = sor.u32 %s35, %s36
      %p38 = scmp.eq.s32.totalorder %s37, 0
      %s40 = sadd.s32 %s39, 1
      %s41 = scalar_select %p38, %s39, %s40
      %p44 = pneg %p38
      %p45 = scmp.eq.s32.totalorder %s15, 1
      %p46 = por %p44, %p45
      %p47 = scmp.ne.s32.totalorder %s39, %s42
      %p48 = scmp.eq.s32.totalorder %s15, 0
      %p49 = por %p47, %p48
      %p50 = scmp.ne.s32.totalorder %s39, %s42
      %p51 = scmp.eq.s32.totalorder %s20, 1
      %p52 = por %p50, %p51
      %p53 = scmp.ne.s32.totalorder %s42, %s43
      %p54 = scmp.eq.s32.totalorder %s20, 0
      %p55 = por %p53, %p54
      %p56 = scmp.ne.s32.totalorder %s42, %s43
      %p57 = scmp.eq.s32.totalorder %s21, 1
      %p58 = por %p56, %p57
      %p60 = scmp.ne.s32.totalorder %s43, %s59
      %p61 = scmp.eq.s32.totalorder %s21, 0
      %p62 = por %p60, %p61
      %s64 = sadd.s32 %s63, 1
      %p67 = scmp.eq.s32.totalorder %s15, 1
      %p68 = scmp.ne.s32.totalorder %s63, %s65
      %p69 = scmp.eq.s32.totalorder %s15, 0
      %p70 = por %p68, %p69
      %p71 = scmp.ne.s32.totalorder %s63, %s65
      %p72 = scmp.eq.s32.totalorder %s20, 1
      %p73 = por %p71, %p72
      %p74 = scmp.ne.s32.totalorder %s65, %s66
      %p75 = scmp.eq.s32.totalorder %s20, 0
      %p76 = por %p74, %p75
      %p77 = scmp.ne.s32.totalorder %s65, %s66
      %p78 = scmp.eq.s32.totalorder %s21, 1
      %p79 = por %p77, %p78
      %p81 = scmp.ne.s32.totalorder %s66, %s80
      %p82 = scmp.eq.s32.totalorder %s21, 0
      %p83 = por %p81, %p82
      %s84 = ssub.s32 %s22, %s34
      %p85 = scmp.eq.s32.totalorder %s84, 0
      %s87 = sadd.s32 %s86, 1
      %s88 = scalar_select %p85, %s86, %s87
      %p91 = pneg %p85
      %p92 = scmp.eq.s32.totalorder %s15, 1
      %p93 = por %p91, %p92
      %p94 = scmp.ne.s32.totalorder %s86, %s89
      %p95 = scmp.eq.s32.totalorder %s15, 0
      %p96 = por %p94, %p95
      %p97 = scmp.ne.s32.totalorder %s86, %s89
      %p98 = scmp.eq.s32.totalorder %s20, 1
      %p99 = por %p97, %p98
      %p100 = scmp.ne.s32.totalorder %s89, %s90
      %p101 = scmp.eq.s32.totalorder %s20, 0
      %p102 = por %p100, %p101
      %p103 = scmp.ne.s32.totalorder %s89, %s90
      %p104 = scmp.eq.s32.totalorder %s21, 1
      %p105 = por %p103, %p104
      %p107 = scmp.ne.s32.totalorder %s90, %s106
      %p108 = scmp.eq.s32.totalorder %s21, 0
      %p109 = por %p107, %p108
      %p110 = scmp.le.s32.totalorder 1, %s15
      %p111 = scmp.lt.s32.totalorder %s15, 3
      %p112 = pnand %p110, %p111
      %p113 = pneg %p112
      // Predicated region
      $region9: #{tpu_custom_call.1} parent=5 // pred_check
        _
      $region10: #{tpu_custom_call.1} parent=5 // pred_check_branch
        %115 = sbr.rel (%p112) target = $region12
      $region11: #{tpu_custom_call.1} parent=5 // pred_region
        %s116 = ssub.s32 %s15, 1
        // Predicated region
        $region13: #{tpu_custom_call.1} parent=11 // pred_check
          %p117 = pneg %p76
        $region14: #{tpu_custom_call.1} parent=11 // pred_check_branch
          %119 = sbr.rel (%p117) target = $region16
        $region15: #{tpu_custom_call.1} parent=11 // pred_region
          %s121 = ssub.s32 16, 16
          %122 = vsyncadd [#allocation7], %s121
          %s124 = sshll.u32 %s1, 4
          %s125 = int_to_ptr.vmem [resolvable:$true] %s124
          %127 = dma.vmem_to_smem %s125, 16, [#allocation8], [#allocation7]
        $region16: #{tpu_custom_call.1} parent=11 // pred_fallthru
          _
      $region12: #{tpu_custom_call.1} parent=5 // pred_fallthru
        _
      %p128 = scmp.lt.s32.totalorder %s15, 2
      // Predicated region
      $region17: #{tpu_custom_call.1} parent=5 // pred_check
        %p129 = pneg %p128
      $region18: #{tpu_custom_call.1} parent=5 // pred_check_branch
        %131 = sbr.rel (%p129) target = $region20
      $region19: #{tpu_custom_call.1} parent=5 // pred_region
        // Predicated region
        $region21: #{tpu_custom_call.1} parent=19 // pred_check
          %p132 = pneg %p49
        $region22: #{tpu_custom_call.1} parent=19 // pred_check_branch
          %134 = sbr.rel (%p132) target = $region24
        $region23: #{tpu_custom_call.1} parent=19 // pred_region
          %s135 = sand.u32 %s39, 1
          %s136 = scalar_lea.sflag [#allocation5], %s135
          %s137 = sand.u32 %s39, 1
          %s138 = smul.addr %s137, 64
          %s139 = scalar_lea.vmem [#allocation4], %s138
          %s140 = smul.u32 4, %s23
          %s142 = ssub.s32 1024, 1024
          %143 = vsyncadd %s136, %s142
          %s144 = smul.addr %s140, 2
          %s145 = smul.addr %s22, 8
          %s146 = sadd.s32 %s144, %s145
          %s147 = smul.addr %s146, 128
          %s148 = scalar_lea.hbm %s0, %s147
          %s149 = sshll.u32 %s139, 4
          %s150 = int_to_ptr.vmem [resolvable:$true] %s149
          %155 = dma.hbm_to_vmem [thread:$0]  %s148, 1024, %s150, %s136, 128, 128, 8
        $region24: #{tpu_custom_call.1} parent=19 // pred_fallthru
          _
      $region20: #{tpu_custom_call.1} parent=5 // pred_fallthru
        _
      %p156 = scmp.le.s32.totalorder 1, %s15
      %p157 = scmp.lt.s32.totalorder %s15, 3
      %p158 = pnand %p156, %p157
      %p159 = pneg %p158
      // Predicated region
      $region25: #{tpu_custom_call.1} parent=5 // pred_check
        _
      $region26: #{tpu_custom_call.1} parent=5 // pred_check_branch
        %161 = sbr.rel (%p158) target = $region28
      $region27: #{tpu_custom_call.1} parent=5 // pred_region
        %s162 = ssub.s32 %s15, 1
        %s163 = sand.u32 %s42, 1
        %s164 = scalar_lea.sflag [#allocation5], %s163
        %s165 = sand.u32 %s42, 1
        %s166 = smul.addr %s165, 64
        %s167 = scalar_lea.vmem [#allocation4], %s166
        // Predicated region
        $region29: #{tpu_custom_call.1} parent=27 // pred_check
          %p168 = pneg %p55
        $region30: #{tpu_custom_call.1} parent=27 // pred_check_branch
          %170 = sbr.rel (%p168) target = $region32
        $region31: #{tpu_custom_call.1} parent=27 // pred_region
          %171 = dma.done %s164, 1024
        $region32: #{tpu_custom_call.1} parent=27 // pred_fallthru
          _
        // Predicated region
        $region33: #{tpu_custom_call.1} parent=27 // pred_check
          %p172 = pneg %p76
        $region34: #{tpu_custom_call.1} parent=27 // pred_check_branch
          %174 = sbr.rel (%p172) target = $region36
        $region35: #{tpu_custom_call.1} parent=27 // pred_region
          %175 = dma.done [#allocation7], 16
        $region36: #{tpu_custom_call.1} parent=27 // pred_fallthru
          _
        %176 = sfence
        %s177 = sand.u32 %s42, 1
        %s178 = scalar_lea.sflag [#allocation5], %s177
        %s179 = sand.u32 %s42, 1
        %s180 = smul.addr %s179, 64
        %s181 = scalar_lea.vmem [#allocation4], %s180
        %p182 = pneg %p55
        %p183 = pneg %p52
        %p184 = pneg %p76
        %p185 = pneg %p73
        %p186 = pneg %p102
        %p187 = pneg %p99
        %s188 = sand.u32 %s89, 1
        %s189 = scalar_lea.sflag [#allocation6], %s188
        %s190 = sand.u32 %s89, 1
        %s191 = smul.addr %s190, 16
        %s192 = scalar_lea.vmem [#allocation9], %s191
        %s193 = smul.u32 4, %s25
        %v194 = vld [vmem:[%s167] sm:$0xff]
        %v195 = vld [vmem:[%s167 + $0x8] sm:$0xff]
        %v196 = vld [vmem:[%s167 + $0x10] sm:$0xff]
        %v197 = vld [vmem:[%s167 + $0x18] sm:$0xff]
        %v198 = vld [vmem:[%s167 + $0x20] sm:$0xff]
        %v199 = vld [vmem:[%s167 + $0x28] sm:$0xff]
        %v200 = vld [vmem:[%s167 + $0x30] sm:$0xff]
        %v201 = vld [vmem:[%s167 + $0x38] sm:$0xff]
        %vm202 = vcmask 130048
        %v203 = vsel %vm202, %v194, 0.0
        %v204 = vsel %vm202, %v196, 0.0
        %v205 = vadd.f32 %v203, %v204
        %v206 = vsel %vm202, %v198, 0.0
        %v207 = vadd.f32 %v205, %v206
        %v208 = vsel %vm202, %v200, 0.0
        %v209 = vadd.f32 %v207, %v208
        %v210 = vsel %vm202, %v195, 0.0
        %v211 = vsel %vm202, %v197, 0.0
        %v212 = vadd.f32 %v210, %v211
        %v213 = vsel %vm202, %v199, 0.0
        %v214 = vadd.f32 %v212, %v213
        %v215 = vsel %vm202, %v201, 0.0
        %v216 = vadd.f32 %v214, %v215
        %v217 = vsel %vm202, %v194, -inf
        %v218 = vsel %vm202, %v196, -inf
        %v219 = vsel %vm202, %v198, -inf
        %v220 = vmax.f32 %v217, %v219
        %v221 = vsel %vm202, %v200, -inf
        %v222 = vmax.f32 %v218, %v221
        %v223 = vmax.f32 %v220, %v222
        %v224 = vsel %vm202, %v195, -inf
        %v225 = vsel %vm202, %v197, -inf
        %v226 = vsel %vm202, %v199, -inf
        %v227 = vmax.f32 %v224, %v226
        %v228 = vsel %vm202, %v201, -inf
        %v229 = vmax.f32 %v225, %v228
        %v230 = vmax.f32 %v227, %v229
        %p231 = scmp.eq.s32.totalorder %s25, 0
        // Predicated region
        $region37: #{tpu_custom_call.1} parent=27 // pred_check
          %p232 = pneg %p231
        $region38: #{tpu_custom_call.1} parent=27 // pred_check_branch
          %234 = sbr.rel (%p232) target = $region40
        $region39: #{tpu_custom_call.1} parent=27 // pred_region
          %vm235 = vcmask 179200
          %236 = vst.msk [vmem:[#allocation2] sm:$0xff] %vm235, 0.0
          %237 = vst.msk [vmem:[#allocation2 + $0x8] sm:$0xff] %vm235, 0.0
          %vm238 = vcmask 177152
          %239 = vst.msk [vmem:[#allocation2 + $0x10] sm:$0x3f] %vm238, 0.0
          %240 = vst.msk [vmem:[#allocation3] sm:$0xff] %vm235, 0.0
          %241 = vst.msk [vmem:[#allocation3 + $0x8] sm:$0xff] %vm235, 0.0
          %242 = vst.msk [vmem:[#allocation3 + $0x10] sm:$0x3f] %vm238, 0.0
          %245 = vrot.lane.b32.xlu0 %v209, 3
          %v246 = vpop.permute.xlu0 %245
          %247 = vrot.lane.b32.xlu0 %v216, 3
          %v248 = vpop.permute.xlu0 %247
          %vm251 = vcmask 154648
          %252 = vst.msk [vmem:[#allocation2 + $0x3] sm:$0xff] %vm251, %v246
          %253 = vst.msk [vmem:[#allocation2 + $0xb] sm:$0xff] %vm251, %v248
          %256 = vrot.lane.b32.xlu0 %v223, 3
          %v257 = vpop.permute.xlu0 %256
          %258 = vrot.lane.b32.xlu0 %v230, 3
          %v259 = vpop.permute.xlu0 %258
          %262 = vst.msk [vmem:[#allocation3 + $0x3] sm:$0xff] %vm251, %v257
          %263 = vst.msk [vmem:[#allocation3 + $0xb] sm:$0xff] %vm251, %v259
        $region40: #{tpu_custom_call.1} parent=27 // pred_fallthru
          _
        %p264 = scmp.gt.s32.totalorder %s25, 0
        // Predicated region
        $region41: #{tpu_custom_call.1} parent=27 // pred_check
          %p265 = pneg %p264
        $region42: #{tpu_custom_call.1} parent=27 // pred_check_branch
          %267 = sbr.rel (%p265) target = $region44
        $region43: #{tpu_custom_call.1} parent=27 // pred_region
          %v268 = vld [vmem:[#allocation2 + $0x3] sm:$0xff]
          %v269 = vld [vmem:[#allocation2 + $0xb] sm:$0xff]
          %272 = vrot.lane.b32.xlu0 %v209, 3
          %v273 = vpop.permute.xlu0 %272
          %274 = vrot.lane.b32.xlu0 %v216, 3
          %v275 = vpop.permute.xlu0 %274
          %v278 = vadd.f32 %v268, %v273
          %v279 = vadd.f32 %v269, %v275
          %vm280 = vcmask 154648
          %281 = vst.msk [vmem:[#allocation2 + $0x3] sm:$0xff] %vm280, %v278
          %282 = vst.msk [vmem:[#allocation2 + $0xb] sm:$0xff] %vm280, %v279
          %v283 = vld [vmem:[#allocation3 + $0x3] sm:$0xff]
          %v284 = vld [vmem:[#allocation3 + $0xb] sm:$0xff]
          %287 = vrot.lane.b32.xlu0 %v223, 3
          %v288 = vpop.permute.xlu0 %287
          %289 = vrot.lane.b32.xlu0 %v230, 3
          %v290 = vpop.permute.xlu0 %289
          %v293 = vmax.f32 %v283, %v288
          %v294 = vmax.f32 %v284, %v290
          %295 = vst.msk [vmem:[#allocation3 + $0x3] sm:$0xff] %vm280, %v293
          %296 = vst.msk [vmem:[#allocation3 + $0xb] sm:$0xff] %vm280, %v294
        $region44: #{tpu_custom_call.1} parent=27 // pred_fallthru
          _
        // Predicated region
        $region45: #{tpu_custom_call.1} parent=27 // pred_check
          %p297 = pneg %p231
        $region46: #{tpu_custom_call.1} parent=27 // pred_check_branch
          %299 = sbr.rel (%p297) target = $region48
        $region47: #{tpu_custom_call.1} parent=27 // pred_region
          %v300 = vld [vmem:[#allocation2] sm:$0xff]
          %v301 = vld [vmem:[#allocation2 + $0x8] sm:$0xff]
          %v302 = vld [vmem:[#allocation2 + $0x10] sm:$0x3f]
          %v303 = vmul.f32 %v300, 0.25
          %v304 = vmul.f32 %v301, 0.25
          %v305 = vmul.f32 %v302, 0.25
          %vm306 = vcmask 179200
          %307 = vst.msk [vmem:[#allocation2] sm:$0xff] %vm306, %v303
          %308 = vst.msk [vmem:[#allocation2 + $0x8] sm:$0xff] %vm306, %v304
          %vm309 = vcmask 177152
          %310 = vst.msk [vmem:[#allocation2 + $0x10] sm:$0x3f] %vm309, %v305
          %v311 = vld [vmem:[#allocation2] sm:$0xff]
          %v312 = vld [vmem:[#allocation2 + $0x8] sm:$0xff]
          %v313 = vld [vmem:[#allocation3] sm:$0xff]
          %v314 = vld [vmem:[#allocation3 + $0x8] sm:$0xff]
          %s315 = sld [smem:[#allocation8]]
          %v316 = vstv %s315
          %v317 = vmul.f32 %v316, %v311
          %v318 = vmul.f32 %v316, %v312
          %v319 = vadd.f32 %v317, 0.0
          %v320 = vadd.f32 %v318, 0.0
          %s321 = sld [smem:[#allocation8 + $0x31]]
          %v322 = vstv %s321
          %v323 = vmul.f32 %v322, %v313
          %v324 = vmul.f32 %v322, %v314
          %v325 = vadd.f32 %v319, %v323
          %v326 = vadd.f32 %v320, %v324
          %s327 = sld [smem:[#allocation8 + $0x1]]
          %v328 = vstv %s327
          %v329 = vmul.f32 %v328, %v311
          %v330 = vmul.f32 %v328, %v312
          %333 = vrot.lane.b32.xlu0 %v329, 127
          %v334 = vpop.permute.xlu0 %333
          %335 = vrot.lane.b32.xlu0 %v330, 127
          %v336 = vpop.permute.xlu0 %335
          %v339 = vadd.f32 %v325, %v334
          %v340 = vadd.f32 %v326, %v336
          %s341 = sld [smem:[#allocation8 + $0x32]]
          %v342 = vstv %s341
          %v343 = vmul.f32 %v342, %v313
          %v344 = vmul.f32 %v342, %v314
          %347 = vrot.lane.b32.xlu0 %v343, 127
          %v348 = vpop.permute.xlu0 %347
          %349 = vrot.lane.b32.xlu0 %v344, 127
          %v350 = vpop.permute.xlu0 %349
          %v353 = vadd.f32 %v339, %v348
          %v354 = vadd.f32 %v340, %v350
          %s355 = sld [smem:[#allocation8 + $0x2]]
          %v356 = vstv %s355
          %v357 = vmul.f32 %v356, %v311
          %v358 = vmul.f32 %v356, %v312
          %361 = vrot.lane.b32.xlu0 %v357, 126
          %v362 = vpop.permute.xlu0 %361
          %363 = vrot.lane.b32.xlu0 %v358, 126
          %v364 = vpop.permute.xlu0 %363
          %v367 = vadd.f32 %v353, %v362
          %v368 = vadd.f32 %v354, %v364
          %s369 = sld [smem:[#allocation8 + $0x33]]
          %v370 = vstv %s369
          %v371 = vmul.f32 %v370, %v313
          %v372 = vmul.f32 %v370, %v314
          %375 = vrot.lane.b32.xlu0 %v371, 126
          %v376 = vpop.permute.xlu0 %375
          %377 = vrot.lane.b32.xlu0 %v372, 126
          %v378 = vpop.permute.xlu0 %377
          %v381 = vadd.f32 %v367, %v376
          %v382 = vadd.f32 %v368, %v378
          %s383 = sld [smem:[#allocation8 + $0x3]]
          %v384 = vstv %s383
          %v385 = vmul.f32 %v384, %v311
          %v386 = vmul.f32 %v384, %v312
          %389 = vrot.lane.b32.xlu0 %v385, 125
          %v390 = vpop.permute.xlu0 %389
          %391 = vrot.lane.b32.xlu0 %v386, 125
          %v392 = vpop.permute.xlu0 %391
          %v395 = vadd.f32 %v381, %v390
          %v396 = vadd.f32 %v382, %v392
          %s397 = sld [smem:[#allocation8 + $0x34]]
          %v398 = vstv %s397
          %v399 = vmul.f32 %v398, %v313
          %v400 = vmul.f32 %v398, %v314
          %403 = vrot.lane.b32.xlu0 %v399, 125
          %v404 = vpop.permute.xlu0 %403
          %405 = vrot.lane.b32.xlu0 %v400, 125
          %v406 = vpop.permute.xlu0 %405
          %v409 = vadd.f32 %v395, %v404
          %v410 = vadd.f32 %v396, %v406
          %s411 = sld [smem:[#allocation8 + $0x4]]
          %v412 = vstv %s411
          %v413 = vmul.f32 %v412, %v311
          %v414 = vmul.f32 %v412, %v312
          %417 = vrot.lane.b32.xlu0 %v413, 124
          %v418 = vpop.permute.xlu0 %417
          %419 = vrot.lane.b32.xlu0 %v414, 124
          %v420 = vpop.permute.xlu0 %419
          %v423 = vadd.f32 %v409, %v418
          %v424 = vadd.f32 %v410, %v420
          %s425 = sld [smem:[#allocation8 + $0x35]]
          %v426 = vstv %s425
          %v427 = vmul.f32 %v426, %v313
          %v428 = vmul.f32 %v426, %v314
          %431 = vrot.lane.b32.xlu0 %v427, 124
          %v432 = vpop.permute.xlu0 %431
          %433 = vrot.lane.b32.xlu0 %v428, 124
          %v434 = vpop.permute.xlu0 %433
          %v437 = vadd.f32 %v423, %v432
          %v438 = vadd.f32 %v424, %v434
          %s439 = sld [smem:[#allocation8 + $0x5]]
          %v440 = vstv %s439
          %v441 = vmul.f32 %v440, %v311
          %v442 = vmul.f32 %v440, %v312
          %445 = vrot.lane.b32.xlu0 %v441, 123
          %v446 = vpop.permute.xlu0 %445
          %447 = vrot.lane.b32.xlu0 %v442, 123
          %v448 = vpop.permute.xlu0 %447
          %v451 = vadd.f32 %v437, %v446
          %v452 = vadd.f32 %v438, %v448
          %s453 = sld [smem:[#allocation8 + $0x36]]
          %v454 = vstv %s453
          %v455 = vmul.f32 %v454, %v313
          %v456 = vmul.f32 %v454, %v314
          %459 = vrot.lane.b32.xlu0 %v455, 123
          %v460 = vpop.permute.xlu0 %459
          %461 = vrot.lane.b32.xlu0 %v456, 123
          %v462 = vpop.permute.xlu0 %461
          %v465 = vadd.f32 %v451, %v460
          %v466 = vadd.f32 %v452, %v462
          %s467 = sld [smem:[#allocation8 + $0x6]]
          %v468 = vstv %s467
          %v469 = vmul.f32 %v468, %v311
          %v470 = vmul.f32 %v468, %v312
          %473 = vrot.lane.b32.xlu0 %v469, 122
          %v474 = vpop.permute.xlu0 %473
          %475 = vrot.lane.b32.xlu0 %v470, 122
          %v476 = vpop.permute.xlu0 %475
          %v479 = vadd.f32 %v465, %v474
          %v480 = vadd.f32 %v466, %v476
          %s481 = sld [smem:[#allocation8 + $0x37]]
          %v482 = vstv %s481
          %v483 = vmul.f32 %v482, %v313
          %v484 = vmul.f32 %v482, %v314
          %487 = vrot.lane.b32.xlu0 %v483, 122
          %v488 = vpop.permute.xlu0 %487
          %489 = vrot.lane.b32.xlu0 %v484, 122
          %v490 = vpop.permute.xlu0 %489
          %v493 = vadd.f32 %v479, %v488
          %v494 = vadd.f32 %v480, %v490
          %v495 = vld [vmem:[#allocation2 + $0x1] sm:$0xff]
          %v496 = vld [vmem:[#allocation2 + $0x9] sm:$0xff]
          %v497 = vld [vmem:[#allocation3 + $0x1] sm:$0xff]
          %v498 = vld [vmem:[#allocation3 + $0x9] sm:$0xff]
          %s499 = sld [smem:[#allocation8 + $0x7]]
          %v500 = vstv %s499
          %v501 = vmul.f32 %v500, %v495
          %v502 = vmul.f32 %v500, %v496
          %v503 = vadd.f32 %v493, %v501
          %v504 = vadd.f32 %v494, %v502
          %s505 = sld [smem:[#allocation8 + $0x38]]
          %v506 = vstv %s505
          %v507 = vmul.f32 %v506, %v497
          %v508 = vmul.f32 %v506, %v498
          %v509 = vadd.f32 %v503, %v507
          %v510 = vadd.f32 %v504, %v508
          %s511 = sld [smem:[#allocation8 + $0x8]]
          %v512 = vstv %s511
          %v513 = vmul.f32 %v512, %v495
          %v514 = vmul.f32 %v512, %v496
          %517 = vrot.lane.b32.xlu0 %v513, 127
          %v518 = vpop.permute.xlu0 %517
          %519 = vrot.lane.b32.xlu0 %v514, 127
          %v520 = vpop.permute.xlu0 %519
          %v523 = vadd.f32 %v509, %v518
          %v524 = vadd.f32 %v510, %v520
          %s525 = sld [smem:[#allocation8 + $0x39]]
          %v526 = vstv %s525
          %v527 = vmul.f32 %v526, %v497
          %v528 = vmul.f32 %v526, %v498
          %531 = vrot.lane.b32.xlu0 %v527, 127
          %v532 = vpop.permute.xlu0 %531
          %533 = vrot.lane.b32.xlu0 %v528, 127
          %v534 = vpop.permute.xlu0 %533
          %v537 = vadd.f32 %v523, %v532
          %v538 = vadd.f32 %v524, %v534
          %s539 = sld [smem:[#allocation8 + $0x9]]
          %v540 = vstv %s539
          %v541 = vmul.f32 %v540, %v495
          %v542 = vmul.f32 %v540, %v496
          %545 = vrot.lane.b32.xlu0 %v541, 126
          %v546 = vpop.permute.xlu0 %545
          %547 = vrot.lane.b32.xlu0 %v542, 126
          %v548 = vpop.permute.xlu0 %547
          %v551 = vadd.f32 %v537, %v546
          %v552 = vadd.f32 %v538, %v548
          %s553 = sld [smem:[#allocation8 + $0x3a]]
          %v554 = vstv %s553
          %v555 = vmul.f32 %v554, %v497
          %v556 = vmul.f32 %v554, %v498
          %559 = vrot.lane.b32.xlu0 %v555, 126
          %v560 = vpop.permute.xlu0 %559
          %561 = vrot.lane.b32.xlu0 %v556, 126
          %v562 = vpop.permute.xlu0 %561
          %v565 = vadd.f32 %v551, %v560
          %v566 = vadd.f32 %v552, %v562
          %s567 = sld [smem:[#allocation8 + $0xa]]
          %v568 = vstv %s567
          %v569 = vmul.f32 %v568, %v495
          %v570 = vmul.f32 %v568, %v496
          %573 = vrot.lane.b32.xlu0 %v569, 125
          %v574 = vpop.permute.xlu0 %573
          %575 = vrot.lane.b32.xlu0 %v570, 125
          %v576 = vpop.permute.xlu0 %575
          %v579 = vadd.f32 %v565, %v574
          %v580 = vadd.f32 %v566, %v576
          %s581 = sld [smem:[#allocation8 + $0x3b]]
          %v582 = vstv %s581
          %v583 = vmul.f32 %v582, %v497
          %v584 = vmul.f32 %v582, %v498
          %587 = vrot.lane.b32.xlu0 %v583, 125
          %v588 = vpop.permute.xlu0 %587
          %589 = vrot.lane.b32.xlu0 %v584, 125
          %v590 = vpop.permute.xlu0 %589
          %v593 = vadd.f32 %v579, %v588
          %v594 = vadd.f32 %v580, %v590
          %s595 = sld [smem:[#allocation8 + $0xb]]
          %v596 = vstv %s595
          %v597 = vmul.f32 %v596, %v495
          %v598 = vmul.f32 %v596, %v496
          %601 = vrot.lane.b32.xlu0 %v597, 124
          %v602 = vpop.permute.xlu0 %601
          %603 = vrot.lane.b32.xlu0 %v598, 124
          %v604 = vpop.permute.xlu0 %603
          %v607 = vadd.f32 %v593, %v602
          %v608 = vadd.f32 %v594, %v604
          %s609 = sld [smem:[#allocation8 + $0x3c]]
          %v610 = vstv %s609
          %v611 = vmul.f32 %v610, %v497
          %v612 = vmul.f32 %v610, %v498
          %615 = vrot.lane.b32.xlu0 %v611, 124
          %v616 = vpop.permute.xlu0 %615
          %617 = vrot.lane.b32.xlu0 %v612, 124
          %v618 = vpop.permute.xlu0 %617
          %v621 = vadd.f32 %v607, %v616
          %v622 = vadd.f32 %v608, %v618
          %s623 = sld [smem:[#allocation8 + $0xc]]
          %v624 = vstv %s623
          %v625 = vmul.f32 %v624, %v495
          %v626 = vmul.f32 %v624, %v496
          %629 = vrot.lane.b32.xlu0 %v625, 123
          %v630 = vpop.permute.xlu0 %629
          %631 = vrot.lane.b32.xlu0 %v626, 123
          %v632 = vpop.permute.xlu0 %631
          %v635 = vadd.f32 %v621, %v630
          %v636 = vadd.f32 %v622, %v632
          %s637 = sld [smem:[#allocation8 + $0x3d]]
          %v638 = vstv %s637
          %v639 = vmul.f32 %v638, %v497
          %v640 = vmul.f32 %v638, %v498
          %643 = vrot.lane.b32.xlu0 %v639, 123
          %v644 = vpop.permute.xlu0 %643
          %645 = vrot.lane.b32.xlu0 %v640, 123
          %v646 = vpop.permute.xlu0 %645
          %v649 = vadd.f32 %v635, %v644
          %v650 = vadd.f32 %v636, %v646
          %s651 = sld [smem:[#allocation8 + $0xd]]
          %v652 = vstv %s651
          %v653 = vmul.f32 %v652, %v495
          %v654 = vmul.f32 %v652, %v496
          %657 = vrot.lane.b32.xlu0 %v653, 122
          %v658 = vpop.permute.xlu0 %657
          %659 = vrot.lane.b32.xlu0 %v654, 122
          %v660 = vpop.permute.xlu0 %659
          %v663 = vadd.f32 %v649, %v658
          %v664 = vadd.f32 %v650, %v660
          %s665 = sld [smem:[#allocation8 + $0x3e]]
          %v666 = vstv %s665
          %v667 = vmul.f32 %v666, %v497
          %v668 = vmul.f32 %v666, %v498
          %671 = vrot.lane.b32.xlu0 %v667, 122
          %v672 = vpop.permute.xlu0 %671
          %673 = vrot.lane.b32.xlu0 %v668, 122
          %v674 = vpop.permute.xlu0 %673
          %v677 = vadd.f32 %v663, %v672
          %v678 = vadd.f32 %v664, %v674
          %v679 = vld [vmem:[#allocation2 + $0x2] sm:$0xff]
          %v680 = vld [vmem:[#allocation2 + $0xa] sm:$0xff]
          %v681 = vld [vmem:[#allocation3 + $0x2] sm:$0xff]
          %v682 = vld [vmem:[#allocation3 + $0xa] sm:$0xff]
          %s683 = sld [smem:[#allocation8 + $0xe]]
          %v684 = vstv %s683
          %v685 = vmul.f32 %v684, %v679
          %v686 = vmul.f32 %v684, %v680
          %v687 = vadd.f32 %v677, %v685
          %v688 = vadd.f32 %v678, %v686
          %s689 = sld [smem:[#allocation8 + $0x3f]]
          %v690 = vstv %s689
          %v691 = vmul.f32 %v690, %v681
          %v692 = vmul.f32 %v690, %v682
          %v693 = vadd.f32 %v687, %v691
          %v694 = vadd.f32 %v688, %v692
          %s695 = sld [smem:[#allocation8 + $0xf]]
          %v696 = vstv %s695
          %v697 = vmul.f32 %v696, %v679
          %v698 = vmul.f32 %v696, %v680
          %701 = vrot.lane.b32.xlu0 %v697, 127
          %v702 = vpop.permute.xlu0 %701
          %703 = vrot.lane.b32.xlu0 %v698, 127
          %v704 = vpop.permute.xlu0 %703
          %v707 = vadd.f32 %v693, %v702
          %v708 = vadd.f32 %v694, %v704
          %s709 = sld [smem:[#allocation8 + $0x40]]
          %v710 = vstv %s709
          %v711 = vmul.f32 %v710, %v681
          %v712 = vmul.f32 %v710, %v682
          %715 = vrot.lane.b32.xlu0 %v711, 127
          %v716 = vpop.permute.xlu0 %715
          %717 = vrot.lane.b32.xlu0 %v712, 127
          %v718 = vpop.permute.xlu0 %717
          %v721 = vadd.f32 %v707, %v716
          %v722 = vadd.f32 %v708, %v718
          %s723 = sld [smem:[#allocation8 + $0x10]]
          %v724 = vstv %s723
          %v725 = vmul.f32 %v724, %v679
          %v726 = vmul.f32 %v724, %v680
          %729 = vrot.lane.b32.xlu0 %v725, 126
          %v730 = vpop.permute.xlu0 %729
          %731 = vrot.lane.b32.xlu0 %v726, 126
          %v732 = vpop.permute.xlu0 %731
          %v735 = vadd.f32 %v721, %v730
          %v736 = vadd.f32 %v722, %v732
          %s737 = sld [smem:[#allocation8 + $0x41]]
          %v738 = vstv %s737
          %v739 = vmul.f32 %v738, %v681
          %v740 = vmul.f32 %v738, %v682
          %743 = vrot.lane.b32.xlu0 %v739, 126
          %v744 = vpop.permute.xlu0 %743
          %745 = vrot.lane.b32.xlu0 %v740, 126
          %v746 = vpop.permute.xlu0 %745
          %v749 = vadd.f32 %v735, %v744
          %v750 = vadd.f32 %v736, %v746
          %s751 = sld [smem:[#allocation8 + $0x11]]
          %v752 = vstv %s751
          %v753 = vmul.f32 %v752, %v679
          %v754 = vmul.f32 %v752, %v680
          %757 = vrot.lane.b32.xlu0 %v753, 125
          %v758 = vpop.permute.xlu0 %757
          %759 = vrot.lane.b32.xlu0 %v754, 125
          %v760 = vpop.permute.xlu0 %759
          %v763 = vadd.f32 %v749, %v758
          %v764 = vadd.f32 %v750, %v760
          %s765 = sld [smem:[#allocation8 + $0x42]]
          %v766 = vstv %s765
          %v767 = vmul.f32 %v766, %v681
          %v768 = vmul.f32 %v766, %v682
          %771 = vrot.lane.b32.xlu0 %v767, 125
          %v772 = vpop.permute.xlu0 %771
          %773 = vrot.lane.b32.xlu0 %v768, 125
          %v774 = vpop.permute.xlu0 %773
          %v777 = vadd.f32 %v763, %v772
          %v778 = vadd.f32 %v764, %v774
          %s779 = sld [smem:[#allocation8 + $0x12]]
          %v780 = vstv %s779
          %v781 = vmul.f32 %v780, %v679
          %v782 = vmul.f32 %v780, %v680
          %785 = vrot.lane.b32.xlu0 %v781, 124
          %v786 = vpop.permute.xlu0 %785
          %787 = vrot.lane.b32.xlu0 %v782, 124
          %v788 = vpop.permute.xlu0 %787
          %v791 = vadd.f32 %v777, %v786
          %v792 = vadd.f32 %v778, %v788
          %s793 = sld [smem:[#allocation8 + $0x43]]
          %v794 = vstv %s793
          %v795 = vmul.f32 %v794, %v681
          %v796 = vmul.f32 %v794, %v682
          %799 = vrot.lane.b32.xlu0 %v795, 124
          %v800 = vpop.permute.xlu0 %799
          %801 = vrot.lane.b32.xlu0 %v796, 124
          %v802 = vpop.permute.xlu0 %801
          %v805 = vadd.f32 %v791, %v800
          %v806 = vadd.f32 %v792, %v802
          %s807 = sld [smem:[#allocation8 + $0x13]]
          %v808 = vstv %s807
          %v809 = vmul.f32 %v808, %v679
          %v810 = vmul.f32 %v808, %v680
          %813 = vrot.lane.b32.xlu0 %v809, 123
          %v814 = vpop.permute.xlu0 %813
          %815 = vrot.lane.b32.xlu0 %v810, 123
          %v816 = vpop.permute.xlu0 %815
          %v819 = vadd.f32 %v805, %v814
          %v820 = vadd.f32 %v806, %v816
          %s821 = sld [smem:[#allocation8 + $0x44]]
          %v822 = vstv %s821
          %v823 = vmul.f32 %v822, %v681
          %v824 = vmul.f32 %v822, %v682
          %827 = vrot.lane.b32.xlu0 %v823, 123
          %v828 = vpop.permute.xlu0 %827
          %829 = vrot.lane.b32.xlu0 %v824, 123
          %v830 = vpop.permute.xlu0 %829
          %v833 = vadd.f32 %v819, %v828
          %v834 = vadd.f32 %v820, %v830
          %s835 = sld [smem:[#allocation8 + $0x14]]
          %v836 = vstv %s835
          %v837 = vmul.f32 %v836, %v679
          %v838 = vmul.f32 %v836, %v680
          %841 = vrot.lane.b32.xlu0 %v837, 122
          %v842 = vpop.permute.xlu0 %841
          %843 = vrot.lane.b32.xlu0 %v838, 122
          %v844 = vpop.permute.xlu0 %843
          %v847 = vadd.f32 %v833, %v842
          %v848 = vadd.f32 %v834, %v844
          %s849 = sld [smem:[#allocation8 + $0x45]]
          %v850 = vstv %s849
          %v851 = vmul.f32 %v850, %v681
          %v852 = vmul.f32 %v850, %v682
          %855 = vrot.lane.b32.xlu0 %v851, 122
          %v856 = vpop.permute.xlu0 %855
          %857 = vrot.lane.b32.xlu0 %v852, 122
          %v858 = vpop.permute.xlu0 %857
          %v861 = vadd.f32 %v847, %v856
          %v862 = vadd.f32 %v848, %v858
          %v863 = vld [vmem:[#allocation2 + $0x3] sm:$0xff]
          %v864 = vld [vmem:[#allocation2 + $0xb] sm:$0xff]
          %v865 = vld [vmem:[#allocation3 + $0x3] sm:$0xff]
          %v866 = vld [vmem:[#allocation3 + $0xb] sm:$0xff]
          %s867 = sld [smem:[#allocation8 + $0x15]]
          %v868 = vstv %s867
          %v869 = vmul.f32 %v868, %v863
          %v870 = vmul.f32 %v868, %v864
          %v871 = vadd.f32 %v861, %v869
          %v872 = vadd.f32 %v862, %v870
          %s873 = sld [smem:[#allocation8 + $0x46]]
          %v874 = vstv %s873
          %v875 = vmul.f32 %v874, %v865
          %v876 = vmul.f32 %v874, %v866
          %v877 = vadd.f32 %v871, %v875
          %v878 = vadd.f32 %v872, %v876
          %s879 = sld [smem:[#allocation8 + $0x16]]
          %v880 = vstv %s879
          %v881 = vmul.f32 %v880, %v863
          %v882 = vmul.f32 %v880, %v864
          %885 = vrot.lane.b32.xlu0 %v881, 127
          %v886 = vpop.permute.xlu0 %885
          %887 = vrot.lane.b32.xlu0 %v882, 127
          %v888 = vpop.permute.xlu0 %887
          %v891 = vadd.f32 %v877, %v886
          %v892 = vadd.f32 %v878, %v888
          %s893 = sld [smem:[#allocation8 + $0x47]]
          %v894 = vstv %s893
          %v895 = vmul.f32 %v894, %v865
          %v896 = vmul.f32 %v894, %v866
          %899 = vrot.lane.b32.xlu0 %v895, 127
          %v900 = vpop.permute.xlu0 %899
          %901 = vrot.lane.b32.xlu0 %v896, 127
          %v902 = vpop.permute.xlu0 %901
          %v905 = vadd.f32 %v891, %v900
          %v906 = vadd.f32 %v892, %v902
          %s907 = sld [smem:[#allocation8 + $0x17]]
          %v908 = vstv %s907
          %v909 = vmul.f32 %v908, %v863
          %v910 = vmul.f32 %v908, %v864
          %913 = vrot.lane.b32.xlu0 %v909, 126
          %v914 = vpop.permute.xlu0 %913
          %915 = vrot.lane.b32.xlu0 %v910, 126
          %v916 = vpop.permute.xlu0 %915
          %v919 = vadd.f32 %v905, %v914
          %v920 = vadd.f32 %v906, %v916
          %s921 = sld [smem:[#allocation8 + $0x48]]
          %v922 = vstv %s921
          %v923 = vmul.f32 %v922, %v865
          %v924 = vmul.f32 %v922, %v866
          %927 = vrot.lane.b32.xlu0 %v923, 126
          %v928 = vpop.permute.xlu0 %927
          %929 = vrot.lane.b32.xlu0 %v924, 126
          %v930 = vpop.permute.xlu0 %929
          %v933 = vadd.f32 %v919, %v928
          %v934 = vadd.f32 %v920, %v930
          %s935 = sld [smem:[#allocation8 + $0x18]]
          %v936 = vstv %s935
          %v937 = vmul.f32 %v936, %v863
          %v938 = vmul.f32 %v936, %v864
          %941 = vrot.lane.b32.xlu0 %v937, 125
          %v942 = vpop.permute.xlu0 %941
          %943 = vrot.lane.b32.xlu0 %v938, 125
          %v944 = vpop.permute.xlu0 %943
          %v947 = vadd.f32 %v933, %v942
          %v948 = vadd.f32 %v934, %v944
          %s949 = sld [smem:[#allocation8 + $0x49]]
          %v950 = vstv %s949
          %v951 = vmul.f32 %v950, %v865
          %v952 = vmul.f32 %v950, %v866
          %955 = vrot.lane.b32.xlu0 %v951, 125
          %v956 = vpop.permute.xlu0 %955
          %957 = vrot.lane.b32.xlu0 %v952, 125
          %v958 = vpop.permute.xlu0 %957
          %v961 = vadd.f32 %v947, %v956
          %v962 = vadd.f32 %v948, %v958
          %s963 = sld [smem:[#allocation8 + $0x19]]
          %v964 = vstv %s963
          %v965 = vmul.f32 %v964, %v863
          %v966 = vmul.f32 %v964, %v864
          %969 = vrot.lane.b32.xlu0 %v965, 124
          %v970 = vpop.permute.xlu0 %969
          %971 = vrot.lane.b32.xlu0 %v966, 124
          %v972 = vpop.permute.xlu0 %971
          %v975 = vadd.f32 %v961, %v970
          %v976 = vadd.f32 %v962, %v972
          %s977 = sld [smem:[#allocation8 + $0x4a]]
          %v978 = vstv %s977
          %v979 = vmul.f32 %v978, %v865
          %v980 = vmul.f32 %v978, %v866
          %983 = vrot.lane.b32.xlu0 %v979, 124
          %v984 = vpop.permute.xlu0 %983
          %985 = vrot.lane.b32.xlu0 %v980, 124
          %v986 = vpop.permute.xlu0 %985
          %v989 = vadd.f32 %v975, %v984
          %v990 = vadd.f32 %v976, %v986
          %s991 = sld [smem:[#allocation8 + $0x1a]]
          %v992 = vstv %s991
          %v993 = vmul.f32 %v992, %v863
          %v994 = vmul.f32 %v992, %v864
          %997 = vrot.lane.b32.xlu0 %v993, 123
          %v998 = vpop.permute.xlu0 %997
          %999 = vrot.lane.b32.xlu0 %v994, 123
          %v1000 = vpop.permute.xlu0 %999
          %v1003 = vadd.f32 %v989, %v998
          %v1004 = vadd.f32 %v990, %v1000
          %s1005 = sld [smem:[#allocation8 + $0x4b]]
          %v1006 = vstv %s1005
          %v1007 = vmul.f32 %v1006, %v865
          %v1008 = vmul.f32 %v1006, %v866
          %1011 = vrot.lane.b32.xlu0 %v1007, 123
          %v1012 = vpop.permute.xlu0 %1011
          %1013 = vrot.lane.b32.xlu0 %v1008, 123
          %v1014 = vpop.permute.xlu0 %1013
          %v1017 = vadd.f32 %v1003, %v1012
          %v1018 = vadd.f32 %v1004, %v1014
          %s1019 = sld [smem:[#allocation8 + $0x1b]]
          %v1020 = vstv %s1019
          %v1021 = vmul.f32 %v1020, %v863
          %v1022 = vmul.f32 %v1020, %v864
          %1025 = vrot.lane.b32.xlu0 %v1021, 122
          %v1026 = vpop.permute.xlu0 %1025
          %1027 = vrot.lane.b32.xlu0 %v1022, 122
          %v1028 = vpop.permute.xlu0 %1027
          %v1031 = vadd.f32 %v1017, %v1026
          %v1032 = vadd.f32 %v1018, %v1028
          %s1033 = sld [smem:[#allocation8 + $0x4c]]
          %v1034 = vstv %s1033
          %v1035 = vmul.f32 %v1034, %v865
          %v1036 = vmul.f32 %v1034, %v866
          %1039 = vrot.lane.b32.xlu0 %v1035, 122
          %v1040 = vpop.permute.xlu0 %1039
          %1041 = vrot.lane.b32.xlu0 %v1036, 122
          %v1042 = vpop.permute.xlu0 %1041
          %v1045 = vadd.f32 %v1031, %v1040
          %v1046 = vadd.f32 %v1032, %v1042
          %v1047 = vld [vmem:[#allocation2 + $0x4] sm:$0xff]
          %v1048 = vld [vmem:[#allocation2 + $0xc] sm:$0xff]
          %v1049 = vld [vmem:[#allocation3 + $0x4] sm:$0xff]
          %v1050 = vld [vmem:[#allocation3 + $0xc] sm:$0xff]
          %s1051 = sld [smem:[#allocation8 + $0x1c]]
          %v1052 = vstv %s1051
          %v1053 = vmul.f32 %v1052, %v1047
          %v1054 = vmul.f32 %v1052, %v1048
          %v1055 = vadd.f32 %v1045, %v1053
          %v1056 = vadd.f32 %v1046, %v1054
          %s1057 = sld [smem:[#allocation8 + $0x4d]]
          %v1058 = vstv %s1057
          %v1059 = vmul.f32 %v1058, %v1049
          %v1060 = vmul.f32 %v1058, %v1050
          %v1061 = vadd.f32 %v1055, %v1059
          %v1062 = vadd.f32 %v1056, %v1060
          %s1063 = sld [smem:[#allocation8 + $0x1d]]
          %v1064 = vstv %s1063
          %v1065 = vmul.f32 %v1064, %v1047
          %v1066 = vmul.f32 %v1064, %v1048
          %1069 = vrot.lane.b32.xlu0 %v1065, 127
          %v1070 = vpop.permute.xlu0 %1069
          %1071 = vrot.lane.b32.xlu0 %v1066, 127
          %v1072 = vpop.permute.xlu0 %1071
          %v1075 = vadd.f32 %v1061, %v1070
          %v1076 = vadd.f32 %v1062, %v1072
          %s1077 = sld [smem:[#allocation8 + $0x4e]]
          %v1078 = vstv %s1077
          %v1079 = vmul.f32 %v1078, %v1049
          %v1080 = vmul.f32 %v1078, %v1050
          %1083 = vrot.lane.b32.xlu0 %v1079, 127
          %v1084 = vpop.permute.xlu0 %1083
          %1085 = vrot.lane.b32.xlu0 %v1080, 127
          %v1086 = vpop.permute.xlu0 %1085
          %v1089 = vadd.f32 %v1075, %v1084
          %v1090 = vadd.f32 %v1076, %v1086
          %s1091 = sld [smem:[#allocation8 + $0x1e]]
          %v1092 = vstv %s1091
          %v1093 = vmul.f32 %v1092, %v1047
          %v1094 = vmul.f32 %v1092, %v1048
          %1097 = vrot.lane.b32.xlu0 %v1093, 126
          %v1098 = vpop.permute.xlu0 %1097
          %1099 = vrot.lane.b32.xlu0 %v1094, 126
          %v1100 = vpop.permute.xlu0 %1099
          %v1103 = vadd.f32 %v1089, %v1098
          %v1104 = vadd.f32 %v1090, %v1100
          %s1105 = sld [smem:[#allocation8 + $0x4f]]
          %v1106 = vstv %s1105
          %v1107 = vmul.f32 %v1106, %v1049
          %v1108 = vmul.f32 %v1106, %v1050
          %1111 = vrot.lane.b32.xlu0 %v1107, 126
          %v1112 = vpop.permute.xlu0 %1111
          %1113 = vrot.lane.b32.xlu0 %v1108, 126
          %v1114 = vpop.permute.xlu0 %1113
          %v1117 = vadd.f32 %v1103, %v1112
          %v1118 = vadd.f32 %v1104, %v1114
          %s1119 = sld [smem:[#allocation8 + $0x1f]]
          %v1120 = vstv %s1119
          %v1121 = vmul.f32 %v1120, %v1047
          %v1122 = vmul.f32 %v1120, %v1048
          %1125 = vrot.lane.b32.xlu0 %v1121, 125
          %v1126 = vpop.permute.xlu0 %1125
          %1127 = vrot.lane.b32.xlu0 %v1122, 125
          %v1128 = vpop.permute.xlu0 %1127
          %v1131 = vadd.f32 %v1117, %v1126
          %v1132 = vadd.f32 %v1118, %v1128
          %s1133 = sld [smem:[#allocation8 + $0x50]]
          %v1134 = vstv %s1133
          %v1135 = vmul.f32 %v1134, %v1049
          %v1136 = vmul.f32 %v1134, %v1050
          %1139 = vrot.lane.b32.xlu0 %v1135, 125
          %v1140 = vpop.permute.xlu0 %1139
          %1141 = vrot.lane.b32.xlu0 %v1136, 125
          %v1142 = vpop.permute.xlu0 %1141
          %v1145 = vadd.f32 %v1131, %v1140
          %v1146 = vadd.f32 %v1132, %v1142
          %s1147 = sld [smem:[#allocation8 + $0x20]]
          %v1148 = vstv %s1147
          %v1149 = vmul.f32 %v1148, %v1047
          %v1150 = vmul.f32 %v1148, %v1048
          %1153 = vrot.lane.b32.xlu0 %v1149, 124
          %v1154 = vpop.permute.xlu0 %1153
          %1155 = vrot.lane.b32.xlu0 %v1150, 124
          %v1156 = vpop.permute.xlu0 %1155
          %v1159 = vadd.f32 %v1145, %v1154
          %v1160 = vadd.f32 %v1146, %v1156
          %s1161 = sld [smem:[#allocation8 + $0x51]]
          %v1162 = vstv %s1161
          %v1163 = vmul.f32 %v1162, %v1049
          %v1164 = vmul.f32 %v1162, %v1050
          %1167 = vrot.lane.b32.xlu0 %v1163, 124
          %v1168 = vpop.permute.xlu0 %1167
          %1169 = vrot.lane.b32.xlu0 %v1164, 124
          %v1170 = vpop.permute.xlu0 %1169
          %v1173 = vadd.f32 %v1159, %v1168
          %v1174 = vadd.f32 %v1160, %v1170
          %s1175 = sld [smem:[#allocation8 + $0x21]]
          %v1176 = vstv %s1175
          %v1177 = vmul.f32 %v1176, %v1047
          %v1178 = vmul.f32 %v1176, %v1048
          %1181 = vrot.lane.b32.xlu0 %v1177, 123
          %v1182 = vpop.permute.xlu0 %1181
          %1183 = vrot.lane.b32.xlu0 %v1178, 123
          %v1184 = vpop.permute.xlu0 %1183
          %v1187 = vadd.f32 %v1173, %v1182
          %v1188 = vadd.f32 %v1174, %v1184
          %s1189 = sld [smem:[#allocation8 + $0x52]]
          %v1190 = vstv %s1189
          %v1191 = vmul.f32 %v1190, %v1049
          %v1192 = vmul.f32 %v1190, %v1050
          %1195 = vrot.lane.b32.xlu0 %v1191, 123
          %v1196 = vpop.permute.xlu0 %1195
          %1197 = vrot.lane.b32.xlu0 %v1192, 123
          %v1198 = vpop.permute.xlu0 %1197
          %v1201 = vadd.f32 %v1187, %v1196
          %v1202 = vadd.f32 %v1188, %v1198
          %s1203 = sld [smem:[#allocation8 + $0x22]]
          %v1204 = vstv %s1203
          %v1205 = vmul.f32 %v1204, %v1047
          %v1206 = vmul.f32 %v1204, %v1048
          %1209 = vrot.lane.b32.xlu0 %v1205, 122
          %v1210 = vpop.permute.xlu0 %1209
          %1211 = vrot.lane.b32.xlu0 %v1206, 122
          %v1212 = vpop.permute.xlu0 %1211
          %v1215 = vadd.f32 %v1201, %v1210
          %v1216 = vadd.f32 %v1202, %v1212
          %s1217 = sld [smem:[#allocation8 + $0x53]]
          %v1218 = vstv %s1217
          %v1219 = vmul.f32 %v1218, %v1049
          %v1220 = vmul.f32 %v1218, %v1050
          %1223 = vrot.lane.b32.xlu0 %v1219, 122
          %v1224 = vpop.permute.xlu0 %1223
          %1225 = vrot.lane.b32.xlu0 %v1220, 122
          %v1226 = vpop.permute.xlu0 %1225
          %v1229 = vadd.f32 %v1215, %v1224
          %v1230 = vadd.f32 %v1216, %v1226
          %v1231 = vld [vmem:[#allocation2 + $0x5] sm:$0xff]
          %v1232 = vld [vmem:[#allocation2 + $0xd] sm:$0xff]
          %v1233 = vld [vmem:[#allocation3 + $0x5] sm:$0xff]
          %v1234 = vld [vmem:[#allocation3 + $0xd] sm:$0xff]
          %s1235 = sld [smem:[#allocation8 + $0x23]]
          %v1236 = vstv %s1235
          %v1237 = vmul.f32 %v1236, %v1231
          %v1238 = vmul.f32 %v1236, %v1232
          %v1239 = vadd.f32 %v1229, %v1237
          %v1240 = vadd.f32 %v1230, %v1238
          %s1241 = sld [smem:[#allocation8 + $0x54]]
          %v1242 = vstv %s1241
          %v1243 = vmul.f32 %v1242, %v1233
          %v1244 = vmul.f32 %v1242, %v1234
          %v1245 = vadd.f32 %v1239, %v1243
          %v1246 = vadd.f32 %v1240, %v1244
          %s1247 = sld [smem:[#allocation8 + $0x24]]
          %v1248 = vstv %s1247
          %v1249 = vmul.f32 %v1248, %v1231
          %v1250 = vmul.f32 %v1248, %v1232
          %1253 = vrot.lane.b32.xlu0 %v1249, 127
          %v1254 = vpop.permute.xlu0 %1253
          %1255 = vrot.lane.b32.xlu0 %v1250, 127
          %v1256 = vpop.permute.xlu0 %1255
          %v1259 = vadd.f32 %v1245, %v1254
          %v1260 = vadd.f32 %v1246, %v1256
          %s1261 = sld [smem:[#allocation8 + $0x55]]
          %v1262 = vstv %s1261
          %v1263 = vmul.f32 %v1262, %v1233
          %v1264 = vmul.f32 %v1262, %v1234
          %1267 = vrot.lane.b32.xlu0 %v1263, 127
          %v1268 = vpop.permute.xlu0 %1267
          %1269 = vrot.lane.b32.xlu0 %v1264, 127
          %v1270 = vpop.permute.xlu0 %1269
          %v1273 = vadd.f32 %v1259, %v1268
          %v1274 = vadd.f32 %v1260, %v1270
          %s1275 = sld [smem:[#allocation8 + $0x25]]
          %v1276 = vstv %s1275
          %v1277 = vmul.f32 %v1276, %v1231
          %v1278 = vmul.f32 %v1276, %v1232
          %1281 = vrot.lane.b32.xlu0 %v1277, 126
          %v1282 = vpop.permute.xlu0 %1281
          %1283 = vrot.lane.b32.xlu0 %v1278, 126
          %v1284 = vpop.permute.xlu0 %1283
          %v1287 = vadd.f32 %v1273, %v1282
          %v1288 = vadd.f32 %v1274, %v1284
          %s1289 = sld [smem:[#allocation8 + $0x56]]
          %v1290 = vstv %s1289
          %v1291 = vmul.f32 %v1290, %v1233
          %v1292 = vmul.f32 %v1290, %v1234
          %1295 = vrot.lane.b32.xlu0 %v1291, 126
          %v1296 = vpop.permute.xlu0 %1295
          %1297 = vrot.lane.b32.xlu0 %v1292, 126
          %v1298 = vpop.permute.xlu0 %1297
          %v1301 = vadd.f32 %v1287, %v1296
          %v1302 = vadd.f32 %v1288, %v1298
          %s1303 = sld [smem:[#allocation8 + $0x26]]
          %v1304 = vstv %s1303
          %v1305 = vmul.f32 %v1304, %v1231
          %v1306 = vmul.f32 %v1304, %v1232
          %1309 = vrot.lane.b32.xlu0 %v1305, 125
          %v1310 = vpop.permute.xlu0 %1309
          %1311 = vrot.lane.b32.xlu0 %v1306, 125
          %v1312 = vpop.permute.xlu0 %1311
          %v1315 = vadd.f32 %v1301, %v1310
          %v1316 = vadd.f32 %v1302, %v1312
          %s1317 = sld [smem:[#allocation8 + $0x57]]
          %v1318 = vstv %s1317
          %v1319 = vmul.f32 %v1318, %v1233
          %v1320 = vmul.f32 %v1318, %v1234
          %1323 = vrot.lane.b32.xlu0 %v1319, 125
          %v1324 = vpop.permute.xlu0 %1323
          %1325 = vrot.lane.b32.xlu0 %v1320, 125
          %v1326 = vpop.permute.xlu0 %1325
          %v1329 = vadd.f32 %v1315, %v1324
          %v1330 = vadd.f32 %v1316, %v1326
          %s1331 = sld [smem:[#allocation8 + $0x27]]
          %v1332 = vstv %s1331
          %v1333 = vmul.f32 %v1332, %v1231
          %v1334 = vmul.f32 %v1332, %v1232
          %1337 = vrot.lane.b32.xlu0 %v1333, 124
          %v1338 = vpop.permute.xlu0 %1337
          %1339 = vrot.lane.b32.xlu0 %v1334, 124
          %v1340 = vpop.permute.xlu0 %1339
          %v1343 = vadd.f32 %v1329, %v1338
          %v1344 = vadd.f32 %v1330, %v1340
          %s1345 = sld [smem:[#allocation8 + $0x58]]
          %v1346 = vstv %s1345
          %v1347 = vmul.f32 %v1346, %v1233
          %v1348 = vmul.f32 %v1346, %v1234
          %1351 = vrot.lane.b32.xlu0 %v1347, 124
          %v1352 = vpop.permute.xlu0 %1351
          %1353 = vrot.lane.b32.xlu0 %v1348, 124
          %v1354 = vpop.permute.xlu0 %1353
          %v1357 = vadd.f32 %v1343, %v1352
          %v1358 = vadd.f32 %v1344, %v1354
          %s1359 = sld [smem:[#allocation8 + $0x28]]
          %v1360 = vstv %s1359
          %v1361 = vmul.f32 %v1360, %v1231
          %v1362 = vmul.f32 %v1360, %v1232
          %1365 = vrot.lane.b32.xlu0 %v1361, 123
          %v1366 = vpop.permute.xlu0 %1365
          %1367 = vrot.lane.b32.xlu0 %v1362, 123
          %v1368 = vpop.permute.xlu0 %1367
          %v1371 = vadd.f32 %v1357, %v1366
          %v1372 = vadd.f32 %v1358, %v1368
          %s1373 = sld [smem:[#allocation8 + $0x59]]
          %v1374 = vstv %s1373
          %v1375 = vmul.f32 %v1374, %v1233
          %v1376 = vmul.f32 %v1374, %v1234
          %1379 = vrot.lane.b32.xlu0 %v1375, 123
          %v1380 = vpop.permute.xlu0 %1379
          %1381 = vrot.lane.b32.xlu0 %v1376, 123
          %v1382 = vpop.permute.xlu0 %1381
          %v1385 = vadd.f32 %v1371, %v1380
          %v1386 = vadd.f32 %v1372, %v1382
          %s1387 = sld [smem:[#allocation8 + $0x29]]
          %v1388 = vstv %s1387
          %v1389 = vmul.f32 %v1388, %v1231
          %v1390 = vmul.f32 %v1388, %v1232
          %1393 = vrot.lane.b32.xlu0 %v1389, 122
          %v1394 = vpop.permute.xlu0 %1393
          %1395 = vrot.lane.b32.xlu0 %v1390, 122
          %v1396 = vpop.permute.xlu0 %1395
          %v1399 = vadd.f32 %v1385, %v1394
          %v1400 = vadd.f32 %v1386, %v1396
          %s1401 = sld [smem:[#allocation8 + $0x5a]]
          %v1402 = vstv %s1401
          %v1403 = vmul.f32 %v1402, %v1233
          %v1404 = vmul.f32 %v1402, %v1234
          %1407 = vrot.lane.b32.xlu0 %v1403, 122
          %v1408 = vpop.permute.xlu0 %1407
          %1409 = vrot.lane.b32.xlu0 %v1404, 122
          %v1410 = vpop.permute.xlu0 %1409
          %v1413 = vadd.f32 %v1399, %v1408
          %v1414 = vadd.f32 %v1400, %v1410
          %v1415 = vld [vmem:[#allocation2 + $0x6] sm:$0xff]
          %v1416 = vld [vmem:[#allocation2 + $0xe] sm:$0xff]
          %v1417 = vld [vmem:[#allocation3 + $0x6] sm:$0xff]
          %v1418 = vld [vmem:[#allocation3 + $0xe] sm:$0xff]
          %s1419 = sld [smem:[#allocation8 + $0x2a]]
          %v1420 = vstv %s1419
          %v1421 = vmul.f32 %v1420, %v1415
          %v1422 = vmul.f32 %v1420, %v1416
          %v1423 = vadd.f32 %v1413, %v1421
          %v1424 = vadd.f32 %v1414, %v1422
          %s1425 = sld [smem:[#allocation8 + $0x5b]]
          %v1426 = vstv %s1425
          %v1427 = vmul.f32 %v1426, %v1417
          %v1428 = vmul.f32 %v1426, %v1418
          %v1429 = vadd.f32 %v1423, %v1427
          %v1430 = vadd.f32 %v1424, %v1428
          %s1431 = sld [smem:[#allocation8 + $0x2b]]
          %v1432 = vstv %s1431
          %v1433 = vmul.f32 %v1432, %v1415
          %v1434 = vmul.f32 %v1432, %v1416
          %1437 = vrot.lane.b32.xlu0 %v1433, 127
          %v1438 = vpop.permute.xlu0 %1437
          %1439 = vrot.lane.b32.xlu0 %v1434, 127
          %v1440 = vpop.permute.xlu0 %1439
          %v1443 = vadd.f32 %v1429, %v1438
          %v1444 = vadd.f32 %v1430, %v1440
          %s1445 = sld [smem:[#allocation8 + $0x5c]]
          %v1446 = vstv %s1445
          %v1447 = vmul.f32 %v1446, %v1417
          %v1448 = vmul.f32 %v1446, %v1418
          %1451 = vrot.lane.b32.xlu0 %v1447, 127
          %v1452 = vpop.permute.xlu0 %1451
          %1453 = vrot.lane.b32.xlu0 %v1448, 127
          %v1454 = vpop.permute.xlu0 %1453
          %v1457 = vadd.f32 %v1443, %v1452
          %v1458 = vadd.f32 %v1444, %v1454
          %s1459 = sld [smem:[#allocation8 + $0x2c]]
          %v1460 = vstv %s1459
          %v1461 = vmul.f32 %v1460, %v1415
          %v1462 = vmul.f32 %v1460, %v1416
          %1465 = vrot.lane.b32.xlu0 %v1461, 126
          %v1466 = vpop.permute.xlu0 %1465
          %1467 = vrot.lane.b32.xlu0 %v1462, 126
          %v1468 = vpop.permute.xlu0 %1467
          %v1471 = vadd.f32 %v1457, %v1466
          %v1472 = vadd.f32 %v1458, %v1468
          %s1473 = sld [smem:[#allocation8 + $0x5d]]
          %v1474 = vstv %s1473
          %v1475 = vmul.f32 %v1474, %v1417
          %v1476 = vmul.f32 %v1474, %v1418
          %1479 = vrot.lane.b32.xlu0 %v1475, 126
          %v1480 = vpop.permute.xlu0 %1479
          %1481 = vrot.lane.b32.xlu0 %v1476, 126
          %v1482 = vpop.permute.xlu0 %1481
          %v1485 = vadd.f32 %v1471, %v1480
          %v1486 = vadd.f32 %v1472, %v1482
          %s1487 = sld [smem:[#allocation8 + $0x2d]]
          %v1488 = vstv %s1487
          %v1489 = vmul.f32 %v1488, %v1415
          %v1490 = vmul.f32 %v1488, %v1416
          %1493 = vrot.lane.b32.xlu0 %v1489, 125
          %v1494 = vpop.permute.xlu0 %1493
          %1495 = vrot.lane.b32.xlu0 %v1490, 125
          %v1496 = vpop.permute.xlu0 %1495
          %v1499 = vadd.f32 %v1485, %v1494
          %v1500 = vadd.f32 %v1486, %v1496
          %s1501 = sld [smem:[#allocation8 + $0x5e]]
          %v1502 = vstv %s1501
          %v1503 = vmul.f32 %v1502, %v1417
          %v1504 = vmul.f32 %v1502, %v1418
          %1507 = vrot.lane.b32.xlu0 %v1503, 125
          %v1508 = vpop.permute.xlu0 %1507
          %1509 = vrot.lane.b32.xlu0 %v1504, 125
          %v1510 = vpop.permute.xlu0 %1509
          %v1513 = vadd.f32 %v1499, %v1508
          %v1514 = vadd.f32 %v1500, %v1510
          %s1515 = sld [smem:[#allocation8 + $0x2e]]
          %v1516 = vstv %s1515
          %v1517 = vmul.f32 %v1516, %v1415
          %v1518 = vmul.f32 %v1516, %v1416
          %1521 = vrot.lane.b32.xlu0 %v1517, 124
          %v1522 = vpop.permute.xlu0 %1521
          %1523 = vrot.lane.b32.xlu0 %v1518, 124
          %v1524 = vpop.permute.xlu0 %1523
          %v1527 = vadd.f32 %v1513, %v1522
          %v1528 = vadd.f32 %v1514, %v1524
          %s1529 = sld [smem:[#allocation8 + $0x5f]]
          %v1530 = vstv %s1529
          %v1531 = vmul.f32 %v1530, %v1417
          %v1532 = vmul.f32 %v1530, %v1418
          %1535 = vrot.lane.b32.xlu0 %v1531, 124
          %v1536 = vpop.permute.xlu0 %1535
          %1537 = vrot.lane.b32.xlu0 %v1532, 124
          %v1538 = vpop.permute.xlu0 %1537
          %v1541 = vadd.f32 %v1527, %v1536
          %v1542 = vadd.f32 %v1528, %v1538
          %s1543 = sld [smem:[#allocation8 + $0x2f]]
          %v1544 = vstv %s1543
          %v1545 = vmul.f32 %v1544, %v1415
          %v1546 = vmul.f32 %v1544, %v1416
          %1549 = vrot.lane.b32.xlu0 %v1545, 123
          %v1550 = vpop.permute.xlu0 %1549
          %1551 = vrot.lane.b32.xlu0 %v1546, 123
          %v1552 = vpop.permute.xlu0 %1551
          %v1555 = vadd.f32 %v1541, %v1550
          %v1556 = vadd.f32 %v1542, %v1552
          %s1557 = sld [smem:[#allocation8 + $0x60]]
          %v1558 = vstv %s1557
          %v1559 = vmul.f32 %v1558, %v1417
          %v1560 = vmul.f32 %v1558, %v1418
          %1563 = vrot.lane.b32.xlu0 %v1559, 123
          %v1564 = vpop.permute.xlu0 %1563
          %1565 = vrot.lane.b32.xlu0 %v1560, 123
          %v1566 = vpop.permute.xlu0 %1565
          %v1569 = vadd.f32 %v1555, %v1564
          %v1570 = vadd.f32 %v1556, %v1566
          %s1571 = sld [smem:[#allocation8 + $0x30]]
          %v1572 = vstv %s1571
          %v1573 = vmul.f32 %v1572, %v1415
          %v1574 = vmul.f32 %v1572, %v1416
          %1577 = vrot.lane.b32.xlu0 %v1573, 122
          %v1578 = vpop.permute.xlu0 %1577
          %1579 = vrot.lane.b32.xlu0 %v1574, 122
          %v1580 = vpop.permute.xlu0 %1579
          %v1583 = vadd.f32 %v1569, %v1578
          %v1584 = vadd.f32 %v1570, %v1580
          %s1585 = sld [smem:[#allocation8 + $0x61]]
          %v1586 = vstv %s1585
          %v1587 = vmul.f32 %v1586, %v1417
          %v1588 = vmul.f32 %v1586, %v1418
          %1591 = vrot.lane.b32.xlu0 %v1587, 122
          %v1592 = vpop.permute.xlu0 %1591
          %1593 = vrot.lane.b32.xlu0 %v1588, 122
          %v1594 = vpop.permute.xlu0 %1593
          %v1597 = vadd.f32 %v1583, %v1592
          %v1598 = vadd.f32 %v1584, %v1594
          %v1599 = vsub.f32 0.0, %v1597
          %v1600 = vsub.f32 0.0, %v1598
          %v1601 = vmul.f32 %v1599, 1.442695
          %v1602 = vpow.pop %v1601
          %v1603 = vmul.f32 %v1600, 1.442695
          %v1604 = vpow.pop %v1603
          %v1605 = vadd.f32 %v1602, 1.0
          %v1606 = vadd.f32 %v1604, 1.0
          %v1607 = vrcp.pop %v1605
          %v1608 = vrcp.pop %v1606
          %1609 = vst.msk [vmem:[%s192] sm:$0xff] %vm202, %v1607
          %1610 = vst.msk [vmem:[%s192 + $0x8] sm:$0xff] %vm202, %v1608
        $region48: #{tpu_custom_call.1} parent=27 // pred_fallthru
          _
        %s1611 = sand.u32 %s89, 1
        %s1612 = scalar_lea.sflag [#allocation6], %s1611
        %s1613 = sand.u32 %s89, 1
        %s1614 = smul.addr %s1613, 16
        %s1615 = scalar_lea.vmem [#allocation9], %s1614
        // Predicated region
        $region49: #{tpu_custom_call.1} parent=27 // pred_check
          %p1616 = pneg %p99
        $region50: #{tpu_custom_call.1} parent=27 // pred_check_branch
          %1618 = sbr.rel (%p1616) target = $region52
        $region51: #{tpu_custom_call.1} parent=27 // pred_region
          %s1620 = ssub.s32 256, 256
          %1621 = vsyncadd %s1612, %s1620
          %s1622 = smul.addr %s24, 2
          %s1623 = smul.addr %s1622, 128
          %s1624 = scalar_lea.hbm %s2, %s1623
          %s1625 = sshll.u32 %s1615, 4
          %s1626 = int_to_ptr.vmem [resolvable:$true] %s1625
          %1631 = dma.vmem_to_hbm [thread:$0]  %s1626, 256, %s1624, %s1612, 128, 128, 8
        $region52: #{tpu_custom_call.1} parent=27 // pred_fallthru
          _
      $region28: #{tpu_custom_call.1} parent=5 // pred_fallthru
        _
      %p1632 = scmp.le.s32.totalorder 2, %s15
      // Predicated region
      $region53: #{tpu_custom_call.1} parent=5 // pred_check
        %p1633 = pneg %p1632
      $region54: #{tpu_custom_call.1} parent=5 // pred_check_branch
        %1635 = sbr.rel (%p1633) target = $region56
      $region55: #{tpu_custom_call.1} parent=5 // pred_region
        %s1636 = ssub.s32 %s15, 2
        // Predicated region
        $region57: #{tpu_custom_call.1} parent=55 // pred_check
          %p1637 = pneg %p105
        $region58: #{tpu_custom_call.1} parent=55 // pred_check_branch
          %1639 = sbr.rel (%p1637) target = $region60
        $region59: #{tpu_custom_call.1} parent=55 // pred_region
          %s1640 = sand.u32 %s90, 1
          %s1641 = scalar_lea.sflag [#allocation6], %s1640
          %s1642 = sand.u32 %s90, 1
          %s1643 = smul.addr %s1642, 16
          %s1644 = scalar_lea.vmem [#allocation9], %s1643
          %1645 = dma.done %s1641, 256
        $region60: #{tpu_custom_call.1} parent=55 // pred_fallthru
          _
      $region56: #{tpu_custom_call.1} parent=5 // pred_fallthru
        _
    $region6: #{tpu_custom_call.1} parent=1 // loop_footer
      %s19 = sadd.s32 1, %s15
    $region7: #{tpu_custom_call.1} parent=1 // loop_footer_branch
      %14 = sbr.rel target = $region3
    $region8: #{tpu_custom_call.1} parent=1 // loop_exit
      _
    %1646 = vsyncpa [#allocation5], 1
    %s1647 = scalar_lea.sflag [#allocation5], 1
    %1648 = vsyncpa %s1647, 1
    %1649 = vsyncpa [#allocation6], 1
    %s1650 = scalar_lea.sflag [#allocation6], 1
    %1651 = vsyncpa %s1650, 1
    %1652 = vsyncpa [#allocation7], 1
    %s1653 = scalar_lea.sflag [#allocation7], 1
    %1654 = vsyncpa %s1653, 1

</llo_original>
